<compile_context>
chip_gen: v7x
topology: tpu7x:2x2x1
jax: 0.10.0
libtpu: 0.0.40
codegen_flags: <defaults>
</compile_context>

<pallas_src>
import functools
import numpy as np
import jax
import jax.numpy as jnp
from jax import lax
from jax.experimental import pallas as pl
from jax.experimental.pallas import tpu as pltpu

try:  # host-side matcher; scipy is optional
    from scipy.optimize import linear_sum_assignment as _linear_sum_assignment
except Exception:  # pragma: no cover
    _linear_sum_assignment = None

INF = 1000000000.0
FOCAL_ALPHA = 0.25
FOCAL_GAMMA = 2.0   # == 2 -> explicit squares in-kernel
EPS = 1e-8


# ----------------------------- Pallas kernel --------------------------------
def _cost_kernel(logits_ref, po_ref, tpo_ref, ids_ref, mask_ref, sz_ref, c_ref,
                 *, cost_class, cost_point):
    # grid = (batch, hw_tile); every ref carries a leading block dim of 1.
    logits = logits_ref[0].astype(jnp.float32)                # (K, THW) lane-dense
    prob = jax.nn.sigmoid(logits)
    q = 1.0 - prob
    # focal-style classification costs; gamma == 2 -> squares (VPU), not pow (EUP)
    neg = (1.0 - FOCAL_ALPHA) * (prob * prob) * (-jnp.log(q + EPS))
    pos = FOCAL_ALPHA * (q * q) * (-jnp.log(prob + EPS))
    diff = pos - neg                                          # (K, THW)
    if cost_class != 1.0:                                     # fold scale pre-matmul
        diff = diff * jnp.float32(cost_class)

    # gather diff[:, tgt_ids] as an MXU matmul contracting over K: the MXU does
    # the K<->HW transpose internally, no materialized (THW, K) copy needed.
    ids = ids_ref[0]                                          # (1, NT) int32
    K = logits.shape[0]
    NT = ids.shape[1]
    class_iota = lax.broadcasted_iota(jnp.int32, (K, NT), 0)
    onehot = (class_iota == ids).astype(jnp.float32)          # (K, NT)
    c = lax.dot_general(diff, onehot,
                        dimension_numbers=(((0,), (0,)), ((), ())),
                        preferred_element_type=jnp.float32)   # (THW, NT)

    # rows whose tr_train_mask <= 0 get (effectively) INF cost. Fold the INF
    # column into the first point-cost term so no full-size (THW, NT) select /
    # predicate broadcast is needed on the VALU.
    mask_row = mask_ref[0]                                    # (1, THW) lane-dense
    inf_col = jnp.transpose(
        jnp.where(mask_row <= 0.0, jnp.float32(INF), jnp.float32(0.0)))  # (THW, 1)

    # L1 cdist between normalized predicted and target points.
    # |cost_point| is folded into 1/img_size (|s*a - s*b| = s*|a-b| for s >= 0).
    sz = sz_ref[0]                                            # (1, P)
    inv = 1.0 / sz
    abs_cp = abs(float(cost_point))
    if abs_cp != 1.0:
        inv = inv * jnp.float32(abs_cp)
    sign_pos = cost_point >= 0.0                              # compile-time
    po = po_ref[0].astype(jnp.float32)                        # (P, THW) native layout
    tpo = tpo_ref[0]                                          # (P, NT)
    P = po.shape[0]
    for d in range(P):                                        # tiny static loop (P == 2)
        s_d = inv[:, d:d + 1]                                 # (1, 1)
        pd = jnp.transpose(po[d:d + 1, :] * s_d)              # (THW, 1), cheap vxpose
        if d == 0 and sign_pos:
            pd = pd + inf_col                                 # masked rows -> ~INF
        td = tpo[d:d + 1, :] * s_d                            # (1, NT)
        term = jnp.abs(pd - td)                               # (THW, NT)
        c = (c + term) if sign_pos else (c - term)
    if not sign_pos:
        # negative cost_point (unusual): INF cannot hide inside the abs term.
        c = c + inf_col

    c_ref[0] = c


# ------------------------------- tiling helpers ------------------------------
def _default_max_tile():
    # larger tiles amortize per-step overhead on v5e/v6e (128 MiB VMEM);
    # stay conservative on v7x (64 MiB VMEM).
    try:
        cap = pltpu.get_tpu_info().vmem_capacity_bytes
    except Exception:
        cap = 64 * 1024 * 1024
    return 4096 if cap >= 128 * 1024 * 1024 else 2048


def _pick_tile_hw(hw, bs, max_tile, min_steps=2):
    if hw <= 128:
        return hw                                   # full-dim block is always legal
    cands = [t for t in (8192, 4096, 2048, 1024, 512, 256, 128)
             if t <= max_tile and hw % t == 0]
    if not cands:
        return hw                                   # only for tiny, unpadded HW
    for t in cands:                                 # keep >= min_steps grid steps
        if bs * (hw // t) >= min_steps:             # (feeds both v7x TensorCores)
            return t
    return cands[-1]


# --------------------------------- wrapper -----------------------------------
def pallas_cost_matrices(pred_logits, pred_points, tgt_points, tgt_ids,
                         tr_train_masks, img_sizes,
                         cost_class=1.0, cost_point=1.0, max_tile=None):
    bs, K, HW = pred_logits.shape
    P = pred_points.shape[1]
    NT = tgt_ids.shape[-1]
    if max_tile is None:
        max_tile = _default_max_tile()

    # pad HW to a multiple of 256 when needed so tiles stay (8,128)-aligned and
    # the grid keeps multiple steps; pad rows get mask 0 -> INF, sliced off below.
    HW_pad = HW
    if HW > 128 and HW % 128 != 0:
        HW_pad = ((HW + 255) // 256) * 256
    if HW_pad != HW:
        p = HW_pad - HW
        pred_logits = jnp.pad(pred_logits, ((0, 0), (0, 0), (0, p)))
        pred_points = jnp.pad(pred_points, ((0, 0), (0, 0), (0, p)))
        tr_train_masks = jnp.pad(tr_train_masks, ((0, 0), (0, p)))

    THW = _pick_tile_hw(HW_pad, bs, max_tile)
    n_hw = HW_pad // THW

    # glue: layout plumbing only (logits / points stay in native layout & dtype)
    mask_r = tr_train_masks.astype(jnp.float32).reshape(bs, 1, HW_pad)   # lane-dense
    tpo_r = jnp.asarray(tgt_points, jnp.float32)                         # (bs, P, NT)
    ids_r = jnp.asarray(tgt_ids, jnp.int32)                              # (bs, 1, NT)
    sz_r = jnp.asarray(img_sizes, jnp.float32)                           # (bs, 1, P)

    kernel = functools.partial(_cost_kernel,
                               cost_class=float(cost_class),
                               cost_point=float(cost_point))

    # VMEM budget: double-buffered output block + compiler (THW, NT) temporaries.
    out_block_bytes = THW * NT * 4
    vmem_limit = int(min(48 * 1024 * 1024,
                         max(32 * 1024 * 1024, 12 * out_block_bytes + (2 << 20))))

    C = pl.pallas_call(
        kernel,
        out_shape=jax.ShapeDtypeStruct((bs, HW_pad, NT), jnp.float32),
        grid=(bs, n_hw),
        in_specs=[
            pl.BlockSpec((1, K, THW), lambda b, h: (b, 0, h)),   # native logits
            pl.BlockSpec((1, P, THW), lambda b, h: (b, 0, h)),   # native points
            pl.BlockSpec((1, P, NT), lambda b, h: (b, 0, 0)),    # target points
            pl.BlockSpec((1, 1, NT), lambda b, h: (b, 0, 0)),    # target ids
            pl.BlockSpec((1, 1, THW), lambda b, h: (b, 0, h)),   # lane-dense mask
            pl.BlockSpec((1, 1, P), lambda b, h: (b, 0, 0)),     # img sizes
        ],
        out_specs=pl.BlockSpec((1, THW, NT), lambda b, h: (b, h, 0)),
        compiler_params=pltpu.CompilerParams(
            dimension_semantics=("parallel", "parallel"),
            vmem_limit_bytes=vmem_limit),
    )(pred_logits, pred_points, tpo_r, ids_r, mask_r, sz_r)

    return C[:, :HW, :] if HW_pad != HW else C


# --------------------- host-side Hungarian (glue) ----------------------------
def _hungarian(cost):
    """Min-cost assignment for cost (n, m), n <= m. Returns assigned column per row."""
    n, m = cost.shape
    u = np.zeros(n + 1)
    v = np.zeros(m + 1)
    p = np.zeros(m + 1, dtype=np.int64)
    way = np.zeros(m + 1, dtype=np.int64)
    for i in range(1, n + 1):
        p[0] = i
        j0 = 0
        minv = np.full(m + 1, np.inf)
        used = np.zeros(m + 1, dtype=bool)
        while True:
            used[j0] = True
            i0 = p[j0]
            cur = cost[i0 - 1, :] - u[i0] - v[1:]
            upd = (~used[1:]) & (cur < minv[1:])
            minv[1:][upd] = cur[upd]
            way[1:][upd] = j0
            free = ~used[1:]
            j1 = int(np.argmin(np.where(free, minv[1:], np.inf))) + 1
            delta = minv[j1]
            u[p[used]] += delta
            v[used] -= delta
            minv[1:][free] -= delta
            j0 = j1
            if p[j0] == 0:
                break
        while True:
            j1 = way[j0]
            p[j0] = p[j1]
            j0 = j1
            if j0 == 0:
                break
    row_to_col = np.zeros(n, dtype=np.int64)
    for j in range(1, m + 1):
        if p[j] != 0:
            row_to_col[p[j] - 1] = j - 1
    return row_to_col


def min_cost_matcher(outputs, targets, cost_class=1.0, cost_point=1.0, nt_pad=128):
    """Mirrors MinCostMatcher.forward. Cost matrices computed by the Pallas kernel."""
    pred_logits = outputs['pred_logits']          # (bs, K, HW)
    pred_points = outputs['pred_points']          # (bs, P, HW)
    tr_train_masks = outputs['tr_train_masks']    # (bs, HW)
    bs, K, HW = pred_logits.shape
    P = pred_points.shape[1]

    nts = [int(np.asarray(t['labels']).shape[0]) for t in targets]
    max_nt = max(nts) if nts else 0
    NT = max(nt_pad, max_nt, 1)
    NT = ((NT + 127) // 128) * 128                # lane-dense output stores

    # build target-side tensors directly in their final kernel layouts (no
    # device-side transposes / reshapes)
    tgt_points = np.zeros((bs, P, NT), np.float32)
    tgt_ids = np.zeros((bs, 1, NT), np.int32)
    img_sizes = np.ones((bs, 1, P), np.float32)
    for i, t in enumerate(targets):
        n = nts[i]
        if n > 0:
            tgt_points[i, :, :n] = np.asarray(t['points'], np.float32).T     # (P, n)
            tgt_ids[i, 0, :n] = np.asarray(t['labels'], np.int32)
        sz = np.asarray(t['image_size'], np.float32).reshape(-1)
        img_sizes[i, 0] = np.broadcast_to(sz, (P,))   # assumes len(image_size) in {1, P}

    C = pallas_cost_matrices(jnp.asarray(pred_logits), jnp.asarray(pred_points),
                             tgt_points, tgt_ids,
                             jnp.asarray(tr_train_masks), img_sizes,
                             cost_class=cost_class, cost_point=cost_point)
    # slice away padded target columns on-device before pulling to host
    n_slice = max(max_nt, 1)
    C_host = np.asarray(jax.block_until_ready(C[:, :, :n_slice]))

    indices = []
    for i in range(bs):
        n = nts[i]
        if n == 0:
            indices.append((np.asarray([], np.int64), np.asarray([], np.int64)))
            continue
        Ci = C_host[i, :, :n]                                  # (HW, n)
        # TODO(synk): linear_sum_assignment (Hungarian) has no Pallas equivalent; done on host.
        if _linear_sum_assignment is not None:
            src, tgt = _linear_sum_assignment(Ci)
            src = np.asarray(src, np.int64)
            tgt = np.asarray(tgt, np.int64)
        else:
            tgt_to_src = _hungarian(Ci.T.astype(np.float64))   # best prediction per target
            src = np.asarray(tgt_to_src, np.int64)
            tgt = np.arange(n, dtype=np.int64)
            order = np.argsort(src)
            src, tgt = src[order], tgt[order]
        indices.append((src, tgt))
    return indices, C_host


# ----------------------------------- main ------------------------------------
if __name__ == "__main__":
    key = jax.random.PRNGKey(0)
    bs, K, H, W, P = 2, 4, 16, 16, 2
    HW = H * W

    k1, k2, k3, k4 = jax.random.split(key, 4)
    pred_logits = jax.random.normal(k1, (bs, K, HW), jnp.float32)
    pred_points = jax.random.uniform(k2, (bs, P, HW), jnp.float32) * float(H)
    tr_train_masks = (jax.random.uniform(k3, (bs, HW)) > 0.2).astype(jnp.float32)

    nts = [5, 3]
    targets = []
    tk = k4
    for i in range(bs):
        tk, ka, kb = jax.random.split(tk, 3)
        targets.append(dict(
            labels=np.asarray(jax.random.randint(ka, (nts[i],), 0, K)),
            points=np.asarray(jax.random.uniform(kb, (nts[i], P)) * float(H)),
            image_size=np.asarray([float(H), float(W)], np.float32),
        ))

    outputs = dict(pred_logits=pred_logits, pred_points=pred_points,
                   tr_train_masks=tr_train_masks)

    indices, C = min_cost_matcher(outputs, targets, cost_class=1.0, cost_point=1.0)

    # --- pure numpy reference of the per-batch cost matrix (semantics check) ---
    logits_np = np.asarray(pred_logits)
    points_np = np.asarray(pred_points)
    masks_np = np.asarray(tr_train_masks)
    for i in range(bs):
        n = nts[i]
        prob = 1.0 / (1.0 + np.exp(-logits_np[i].T))                       # (HW, K)
        neg = (1 - FOCAL_ALPHA) * prob ** FOCAL_GAMMA * -np.log(1 - prob + EPS)
        pos = FOCAL_ALPHA * (1 - prob) ** FOCAL_GAMMA * -np.log(prob + EPS)
        ids = np.asarray(targets[i]['labels'])
        cc = pos[:, ids] - neg[:, ids]                                      # (HW, n)
        sz = np.asarray(targets[i]['image_size'], np.float32)
        op = points_np[i].T / sz                                            # (HW, P)
        tp = np.asarray(targets[i]['points'], np.float32) / sz              # (n, P)
        cpo = np.abs(op[:, None, :] - tp[None, :, :]).sum(-1)               # (HW, n)
        ref = 1.0 * cc + 1.0 * cpo
        valid = masks_np[i] > 0
        # unmasked rows must match the reference exactly (within fp32 tolerance)
        np.testing.assert_allclose(C[i, valid, :n], ref[valid], rtol=1e-4, atol=1e-4)
        # masked rows carry INF folded in-kernel (INF + small cost), i.e. ~1e9
        assert np.all(C[i, ~valid, :n] >= 0.9 * INF)
        # matched predictions must be distinct, valid, and never masked rows
        src, tgt = indices[i]
        assert len(set(src.tolist())) == n and len(tgt) == n
        assert np.all(masks_np[i][src] > 0)

    print("KERNEL_OK")
</pallas_src>

<mosaic_0001>
module attributes {stable_mosaic.version = 11 : i64} {
  func.func @_cost_kernel(%arg0: i32, %arg1: i32, %arg2: memref<1x4x256xf32, #tpu.memory_space<vmem>>, %arg3: memref<1x2x256xf32, #tpu.memory_space<vmem>>, %arg4: memref<1x2x128xf32, #tpu.memory_space<vmem>>, %arg5: memref<1x1x128xi32, #tpu.memory_space<vmem>>, %arg6: memref<1x1x256xf32, #tpu.memory_space<vmem>>, %arg7: memref<1x1x2xf32, #tpu.memory_space<vmem>>, %arg8: memref<1x256x128xf32, #tpu.memory_space<vmem>>) attributes {dimension_semantics = [#tpu.dimension_semantics<parallel>, #tpu.dimension_semantics<parallel>], iteration_bounds = array<i64: 2, 1>, scalar_prefetch = 0 : i64, scratch_operands = 0 : i64, tpu.core_type = #tpu.core_type<tc>, window_params = [{transform_indices = @transform_0, window_bounds = array<i64: 1, 4, 256>}, {transform_indices = @transform_1, window_bounds = array<i64: 1, 2, 256>}, {transform_indices = @transform_2, window_bounds = array<i64: 1, 2, 128>}, {transform_indices = @transform_3, window_bounds = array<i64: 1, 1, 128>}, {transform_indices = @transform_4, window_bounds = array<i64: 1, 1, 256>}, {transform_indices = @transform_5, window_bounds = array<i64: 1, 1, 2>}, {transform_indices = @transform_6, window_bounds = array<i64: 1, 256, 128>}]} {
    %c0 = arith.constant 0 : index
    %c0_0 = arith.constant 0 : index
    %c0_1 = arith.constant 0 : index
    %0 = vector.load %arg2[%c0, %c0_0, %c0_1] : memref<1x4x256xf32, #tpu.memory_space<vmem>>, vector<1x4x256xf32>
    %1 = vector.shape_cast %0 : vector<1x4x256xf32> to vector<4x256xf32>
    %2 = arith.negf %1 : vector<4x256xf32>
    %3 = math.exp %2 : vector<4x256xf32>
    %cst = arith.constant 1.000000e+00 : f32
    %4 = vector.broadcast %cst : f32 to vector<4x256xf32>
    %5 = arith.addf %4, %3 : vector<4x256xf32>
    %6 = arith.divf %4, %5 : vector<4x256xf32>
    %cst_2 = arith.constant 1.000000e+00 : f32
    %7 = vector.broadcast %cst_2 : f32 to vector<4x256xf32>
    %8 = arith.subf %7, %6 : vector<4x256xf32>
    %9 = arith.mulf %6, %6 : vector<4x256xf32>
    %cst_3 = arith.constant 7.500000e-01 : f32
    %10 = vector.broadcast %cst_3 : f32 to vector<4x256xf32>
    %11 = arith.mulf %10, %9 : vector<4x256xf32>
    %cst_4 = arith.constant 9.99999993E-9 : f32
    %12 = vector.broadcast %cst_4 : f32 to vector<4x256xf32>
    %13 = arith.addf %8, %12 : vector<4x256xf32>
    %14 = math.log %13 : vector<4x256xf32>
    %cst_5 = arith.constant 0.000000e+00 : f32
    %15 = vector.broadcast %cst_5 : f32 to vector<4x256xf32>
    %16 = arith.subf %15, %14 : vector<4x256xf32>
    %17 = arith.mulf %11, %16 : vector<4x256xf32>
    %18 = arith.mulf %8, %8 : vector<4x256xf32>
    %cst_6 = arith.constant 2.500000e-01 : f32
    %19 = vector.broadcast %cst_6 : f32 to vector<4x256xf32>
    %20 = arith.mulf %19, %18 : vector<4x256xf32>
    %cst_7 = arith.constant 9.99999993E-9 : f32
    %21 = vector.broadcast %cst_7 : f32 to vector<4x256xf32>
    %22 = arith.addf %6, %21 : vector<4x256xf32>
    %23 = math.log %22 : vector<4x256xf32>
    %cst_8 = arith.constant 0.000000e+00 : f32
    %24 = vector.broadcast %cst_8 : f32 to vector<4x256xf32>
    %25 = arith.subf %24, %23 : vector<4x256xf32>
    %26 = arith.mulf %20, %25 : vector<4x256xf32>
    %27 = arith.subf %26, %17 : vector<4x256xf32>
    %c0_9 = arith.constant 0 : index
    %c0_10 = arith.constant 0 : index
    %c0_11 = arith.constant 0 : index
    %28 = vector.load %arg5[%c0_9, %c0_10, %c0_11] : memref<1x1x128xi32, #tpu.memory_space<vmem>>, vector<1x1x128xi32>
    %29 = vector.shape_cast %28 : vector<1x1x128xi32> to vector<1x128xi32>
    %30 = tpu.iota {dimensions = array<i32: 0>} : vector<4x128xi32>
    %31 = vector.broadcast %29 : vector<1x128xi32> to vector<4x128xi32>
    %32 = arith.cmpi eq, %30, %31 : vector<4x128xi32>
    %33 = arith.extui %32 : vector<4x128xi1> to vector<4x128xi32>
    %34 = arith.sitofp %33 : vector<4x128xi32> to vector<4x128xf32>
    %cst_12 = arith.constant dense<0.000000e+00> : vector<256x128xf32>
    %35 = tpu.matmul %27, %34, %cst_12 {dimension_numbers = #tpu.dot_dimension_numbers<[0], [0], [1], [1], [0, 1, 1, 1], [], []>} : vector<4x256xf32>, vector<4x128xf32>, vector<256x128xf32> -> vector<256x128xf32>
    %c0_13 = arith.constant 0 : index
    %c0_14 = arith.constant 0 : index
    %c0_15 = arith.constant 0 : index
    %36 = vector.load %arg6[%c0_13, %c0_14, %c0_15] : memref<1x1x256xf32, #tpu.memory_space<vmem>>, vector<1x1x256xf32>
    %37 = vector.shape_cast %36 : vector<1x1x256xf32> to vector<1x256xf32>
    %cst_16 = arith.constant 0.000000e+00 : f32
    %38 = vector.broadcast %cst_16 : f32 to vector<1x256xf32>
    %39 = arith.cmpf ole, %37, %38 : vector<1x256xf32>
    %cst_17 = arith.constant 1.000000e+09 : f32
    %cst_18 = arith.constant 0.000000e+00 : f32
    %40 = vector.broadcast %cst_17 : f32 to vector<1x256xf32>
    %41 = vector.broadcast %cst_18 : f32 to vector<1x256xf32>
    %42 = arith.select %39, %40, %41 : vector<1x256xi1>, vector<1x256xf32>
    %43 = tpu.transpose %42, [1, 0] : vector<1x256xf32> -> vector<256x1xf32>
    %c0_19 = arith.constant 0 : index
    %c0_20 = arith.constant 0 : index
    %c0_21 = arith.constant 0 : index
    %44 = vector.load %arg7[%c0_19, %c0_20, %c0_21] : memref<1x1x2xf32, #tpu.memory_space<vmem>>, vector<1x1x2xf32>
    %45 = vector.shape_cast %44 : vector<1x1x2xf32> to vector<1x2xf32>
    %cst_22 = arith.constant 1.000000e+00 : f32
    %46 = vector.broadcast %cst_22 : f32 to vector<1x2xf32>
    %47 = arith.divf %46, %45 : vector<1x2xf32>
    %c0_23 = arith.constant 0 : index
    %c0_24 = arith.constant 0 : index
    %c0_25 = arith.constant 0 : index
    %48 = vector.load %arg3[%c0_23, %c0_24, %c0_25] : memref<1x2x256xf32, #tpu.memory_space<vmem>>, vector<1x2x256xf32>
    %49 = vector.shape_cast %48 : vector<1x2x256xf32> to vector<2x256xf32>
    %c0_26 = arith.constant 0 : index
    %c0_27 = arith.constant 0 : index
    %c0_28 = arith.constant 0 : index
    %50 = vector.load %arg4[%c0_26, %c0_27, %c0_28] : memref<1x2x128xf32, #tpu.memory_space<vmem>>, vector<1x2x128xf32>
    %51 = vector.shape_cast %50 : vector<1x2x128xf32> to vector<2x128xf32>
    %52 = vector.extract_strided_slice %47 {offsets = [0, 0], sizes = [1, 1], strides = [1, 1]} : vector<1x2xf32> to vector<1x1xf32>
    %53 = vector.extract_strided_slice %49 {offsets = [0, 0], sizes = [1, 256], strides = [1, 1]} : vector<2x256xf32> to vector<1x256xf32>
    %54 = vector.broadcast %52 : vector<1x1xf32> to vector<1x256xf32>
    %55 = arith.mulf %53, %54 : vector<1x256xf32>
    %56 = tpu.transpose %55, [1, 0] : vector<1x256xf32> -> vector<256x1xf32>
    %57 = arith.addf %56, %43 : vector<256x1xf32>
    %58 = vector.extract_strided_slice %51 {offsets = [0, 0], sizes = [1, 128], strides = [1, 1]} : vector<2x128xf32> to vector<1x128xf32>
    %59 = vector.broadcast %52 : vector<1x1xf32> to vector<1x128xf32>
    %60 = arith.mulf %58, %59 : vector<1x128xf32>
    %61 = vector.broadcast %57 : vector<256x1xf32> to vector<256x128xf32>
    %62 = vector.broadcast %60 : vector<1x128xf32> to vector<256x128xf32>
    %63 = arith.subf %61, %62 : vector<256x128xf32>
    %64 = math.absf %63 : vector<256x128xf32>
    %65 = arith.addf %35, %64 : vector<256x128xf32>
    %66 = vector.extract_strided_slice %47 {offsets = [0, 1], sizes = [1, 1], strides = [1, 1]} : vector<1x2xf32> to vector<1x1xf32>
    %67 = vector.extract_strided_slice %49 {offsets = [1, 0], sizes = [1, 256], strides = [1, 1]} : vector<2x256xf32> to vector<1x256xf32>
    %68 = vector.broadcast %66 : vector<1x1xf32> to vector<1x256xf32>
    %69 = arith.mulf %67, %68 : vector<1x256xf32>
    %70 = tpu.transpose %69, [1, 0] : vector<1x256xf32> -> vector<256x1xf32>
    %71 = vector.extract_strided_slice %51 {offsets = [1, 0], sizes = [1, 128], strides = [1, 1]} : vector<2x128xf32> to vector<1x128xf32>
    %72 = vector.broadcast %66 : vector<1x1xf32> to vector<1x128xf32>
    %73 = arith.mulf %71, %72 : vector<1x128xf32>
    %74 = vector.broadcast %70 : vector<256x1xf32> to vector<256x128xf32>
    %75 = vector.broadcast %73 : vector<1x128xf32> to vector<256x128xf32>
    %76 = arith.subf %74, %75 : vector<256x128xf32>
    %77 = math.absf %76 : vector<256x128xf32>
    %78 = arith.addf %65, %77 : vector<256x128xf32>
    %c0_29 = arith.constant 0 : index
    %c0_30 = arith.constant 0 : index
    %c0_31 = arith.constant 0 : index
    %79 = vector.load %arg8[%c0_29, %c0_30, %c0_31] : memref<1x256x128xf32, #tpu.memory_space<vmem>>, vector<1x256x128xf32>
    %80 = vector.shape_cast %79 : vector<1x256x128xf32> to vector<256x128xf32>
    %81 = vector.shape_cast %78 : vector<256x128xf32> to vector<1x256x128xf32>
    tpu.vector_store %arg8[%c0_29, %c0_30, %c0_31], %81 {strides = array<i32>} : memref<1x256x128xf32, #tpu.memory_space<vmem>>, vector<1x256x128xf32>,
    return
  }
  func.func @transform_0(%arg0: i32, %arg1: i32) -> (i32, i32, i32) {
    %c0_i32 = arith.constant 0 : i32
    %c0_i32_0 = arith.constant 0 : i32
    return %arg0, %c0_i32, %arg1 : i32, i32, i32
  }
  func.func @transform_1(%arg0: i32, %arg1: i32) -> (i32, i32, i32) {
    %c0_i32 = arith.constant 0 : i32
    %c0_i32_0 = arith.constant 0 : i32
    return %arg0, %c0_i32, %arg1 : i32, i32, i32
  }
  func.func @transform_2(%arg0: i32, %arg1: i32) -> (i32, i32, i32) {
    %c0_i32 = arith.constant 0 : i32
    %c0_i32_0 = arith.constant 0 : i32
    %c0_i32_1 = arith.constant 0 : i32
    return %arg0, %c0_i32, %c0_i32_0 : i32, i32, i32
  }
  func.func @transform_3(%arg0: i32, %arg1: i32) -> (i32, i32, i32) {
    %c0_i32 = arith.constant 0 : i32
    %c0_i32_0 = arith.constant 0 : i32
    %c0_i32_1 = arith.constant 0 : i32
    return %arg0, %c0_i32, %c0_i32_0 : i32, i32, i32
  }
  func.func @transform_4(%arg0: i32, %arg1: i32) -> (i32, i32, i32) {
    %c0_i32 = arith.constant 0 : i32
    %c0_i32_0 = arith.constant 0 : i32
    return %arg0, %c0_i32, %arg1 : i32, i32, i32
  }
  func.func @transform_5(%arg0: i32, %arg1: i32) -> (i32, i32, i32) {
    %c0_i32 = arith.constant 0 : i32
    %c0_i32_0 = arith.constant 0 : i32
    %c0_i32_1 = arith.constant 0 : i32
    return %arg0, %c0_i32, %c0_i32_0 : i32, i32, i32
  }
  func.func @transform_6(%arg0: i32, %arg1: i32) -> (i32, i32, i32) {
    %c0_i32 = arith.constant 0 : i32
    %c0_i32_0 = arith.constant 0 : i32
    return %arg0, %arg1, %c0_i32 : i32, i32, i32
  }
}

</mosaic_0001>

<llo_original>
// kernel: tpu_custom_call.1
$region0: #{tpu_custom_call.1}
  #allocation0 [shape = 'u32[]', space=smem, size = 0x4, offset = 0x4, fixed_abs, tag = 'smem constant byte address 0x4 - core index']
  #allocation1 [shape = 'u32[144,128]{1,0:T(1,128)}', space=vmem, size = 0x12000, scoped, tag = 'internal scratch']
  %s0 = inlined_call_operand.hbm [shape: f32[2,4,256], index: 0, kind: input, shape index: {}]
  %s1 = inlined_call_operand.hbm [shape: f32[2,2,256], index: 1, kind: input, shape index: {}]
  %s2 = inlined_call_operand.vmem [shape: f32[2,2,128], index: 2, kind: input, shape index: {}]
  %s3 = inlined_call_operand.vmem [shape: s32[2,1,128], index: 3, kind: input, shape index: {}]
  %s4 = inlined_call_operand.vmem [shape: f32[2,1,256], index: 4, kind: input, shape index: {}]
  %s5 = inlined_call_operand.vmem [shape: f32[2,1,2], index: 5, kind: input, shape index: {}]
  %s6 = inlined_call_operand.hbm [shape: f32[2,256,128], index: 6, kind: output, shape index: {}]
  %s7 = sld [smem:[#allocation0]]
  $region65: #{tpu_custom_call.1} parent=0
    _
  %s9 = ssub.s32 1, %s7
  %s10 = scalar_select 0, %s9, %s7
  $region1: #{tpu_custom_call.1} parent=0
    #allocation2 [shape = 'u8[8192]{0}', space=vmem, size = 0x2000, scoped, tag = 'input window, operand 0']
    #allocation3 [shape = 's32[2]{0}', space=sflag, size = 0x8, scoped, tag = 'scoped memory for tpu_custom_call.1']
    #allocation4 [shape = 's32[2]{0}', space=sflag, size = 0x8, scoped, tag = 'scoped memory for tpu_custom_call.1']
    #allocation5 [shape = 'u8[4096]{0}', space=vmem, size = 0x1000, scoped, tag = 'input window, operand 1']
    #allocation6 [shape = 's32[2]{0}', space=sflag, size = 0x8, scoped, tag = 'scoped memory for tpu_custom_call.1']
    #allocation7 [shape = 'u8[262144]{0}', space=vmem, size = 0x40000, scoped, tag = 'output window, operand 0']
    %11 = vsyncpa [#allocation3], 0
    %s12 = scalar_lea.sflag [#allocation3], 1
    %13 = vsyncpa %s12, 0
    %14 = vsyncpa [#allocation6], 0
    %s15 = scalar_lea.sflag [#allocation6], 1
    %16 = vsyncpa %s15, 0
    %17 = vsyncpa [#allocation4], 0
    %s18 = scalar_lea.sflag [#allocation4], 1
    %19 = vsyncpa %s18, 0
    loop: start=0, step=1, limit=4
    $region2: #{tpu_custom_call.1} parent=1 // loop_pre_header
      _
    $region3: #{tpu_custom_call.1} parent=1 // loop_header
      %s21 = sphi 0, %s25
      %p22 = scmp.ge.s32.totalorder %s21, 4
      %s28 = sphi 0, %s40
      %s29 = sphi 0, %s36
      %s30 = sphi 0, %s28
      %s31 = sphi 0, %s29
      %s32 = sphi 0, %s30
      %s33 = sphi 0, %s31
      %s45 = sphi 0, %s47
      %s48 = sphi 0, %s45
      %s49 = sphi 0, %s48
      %s65 = sphi 0, %s49
      %s73 = sphi 0, %s75
      %s76 = sphi 0, %s73
      %s77 = sphi 0, %s76
      %s93 = sphi 0, %s77
      %s99 = sphi 0, %s101
      %s102 = sphi 0, %s99
      %s103 = sphi 0, %s102
      %s119 = sphi 0, %s103
      %s125 = sphi 0, %s127
      %s128 = sphi 0, %s125
      %s129 = sphi 0, %s128
      %s145 = sphi 0, %s129
      %s153 = sphi 0, %s155
      %s156 = sphi 0, %s153
      %s157 = sphi 0, %s156
      %s173 = sphi 0, %s157
      %s179 = sphi 0, %s181
      %s182 = sphi 0, %s179
      %s183 = sphi 0, %s182
      %s199 = sphi 0, %s183
      %s207 = sphi 0, %s209
      %s210 = sphi 0, %s207
      %s211 = sphi 0, %s210
      %s227 = sphi 0, %s211
    $region4: #{tpu_custom_call.1} parent=1 // loop_header_branch
      %24 = sbr.rel (%p22) target = $region8
    $region5: #{tpu_custom_call.1} parent=1 // loop_body
      %s26 = ssub.s32 %s21, 1
      %s27 = ssub.s32 %s21, 2
      %s34 = sadd.s32 1, %s29
      %p35 = scmp.ge.s32.totalorder %s34, 1
      %s36 = scalar_select %p35, 0, %s34
      %s37 = sadd.s32 1, %s28
      %s38 = scalar_select %p35, %s37, %s28
      %p39 = scmp.ge.s32.totalorder %s38, 2
      %s40 = scalar_select %p39, 0, %s38
      %s41 = ssub.s32 %s28, %s40
      %s42 = ssub.s32 %s29, %s36
      %s43 = sor.u32 %s41, %s42
      %p44 = scmp.eq.s32.totalorder %s43, 0
      %s46 = sadd.s32 %s45, 1
      %s47 = scalar_select %p44, %s45, %s46
      %p50 = pneg %p44
      %p51 = scmp.eq.s32.totalorder %s21, 1
      %p52 = por %p50, %p51
      %p53 = scmp.ne.s32.totalorder %s45, %s48
      %p54 = scmp.eq.s32.totalorder %s21, 0
      %p55 = por %p53, %p54
      %p56 = scmp.ne.s32.totalorder %s45, %s48
      %p57 = scmp.eq.s32.totalorder %s26, 1
      %p58 = por %p56, %p57
      %p59 = scmp.ne.s32.totalorder %s48, %s49
      %p60 = scmp.eq.s32.totalorder %s26, 0
      %p61 = por %p59, %p60
      %p62 = scmp.ne.s32.totalorder %s48, %s49
      %p63 = scmp.eq.s32.totalorder %s27, 1
      %p64 = por %p62, %p63
      %p66 = scmp.ne.s32.totalorder %s49, %s65
      %p67 = scmp.eq.s32.totalorder %s27, 0
      %p68 = por %p66, %p67
      %s69 = ssub.s32 %s28, %s40
      %s70 = ssub.s32 %s29, %s36
      %s71 = sor.u32 %s69, %s70
      %p72 = scmp.eq.s32.totalorder %s71, 0
      %s74 = sadd.s32 %s73, 1
      %s75 = scalar_select %p72, %s73, %s74
      %p78 = pneg %p72
      %p79 = scmp.eq.s32.totalorder %s21, 1
      %p80 = por %p78, %p79
      %p81 = scmp.ne.s32.totalorder %s73, %s76
      %p82 = scmp.eq.s32.totalorder %s21, 0
      %p83 = por %p81, %p82
      %p84 = scmp.ne.s32.totalorder %s73, %s76
      %p85 = scmp.eq.s32.totalorder %s26, 1
      %p86 = por %p84, %p85
      %p87 = scmp.ne.s32.totalorder %s76, %s77
      %p88 = scmp.eq.s32.totalorder %s26, 0
      %p89 = por %p87, %p88
      %p90 = scmp.ne.s32.totalorder %s76, %s77
      %p91 = scmp.eq.s32.totalorder %s27, 1
      %p92 = por %p90, %p91
      %p94 = scmp.ne.s32.totalorder %s77, %s93
      %p95 = scmp.eq.s32.totalorder %s27, 0
      %p96 = por %p94, %p95
      %s97 = ssub.s32 %s28, %s40
      %p98 = scmp.eq.s32.totalorder %s97, 0
      %s100 = sadd.s32 %s99, 1
      %s101 = scalar_select %p98, %s99, %s100
      %p104 = pneg %p98
      %p105 = scmp.eq.s32.totalorder %s21, 1
      %p106 = por %p104, %p105
      %p107 = scmp.ne.s32.totalorder %s99, %s102
      %p108 = scmp.eq.s32.totalorder %s21, 0
      %p109 = por %p107, %p108
      %p110 = scmp.ne.s32.totalorder %s99, %s102
      %p111 = scmp.eq.s32.totalorder %s26, 1
      %p112 = por %p110, %p111
      %p113 = scmp.ne.s32.totalorder %s102, %s103
      %p114 = scmp.eq.s32.totalorder %s26, 0
      %p115 = por %p113, %p114
      %p116 = scmp.ne.s32.totalorder %s102, %s103
      %p117 = scmp.eq.s32.totalorder %s27, 1
      %p118 = por %p116, %p117
      %p120 = scmp.ne.s32.totalorder %s103, %s119
      %p121 = scmp.eq.s32.totalorder %s27, 0
      %p122 = por %p120, %p121
      %s123 = ssub.s32 %s28, %s40
      %p124 = scmp.eq.s32.totalorder %s123, 0
      %s126 = sadd.s32 %s125, 1
      %s127 = scalar_select %p124, %s125, %s126
      %p130 = pneg %p124
      %p131 = scmp.eq.s32.totalorder %s21, 1
      %p132 = por %p130, %p131
      %p133 = scmp.ne.s32.totalorder %s125, %s128
      %p134 = scmp.eq.s32.totalorder %s21, 0
      %p135 = por %p133, %p134
      %p136 = scmp.ne.s32.totalorder %s125, %s128
      %p137 = scmp.eq.s32.totalorder %s26, 1
      %p138 = por %p136, %p137
      %p139 = scmp.ne.s32.totalorder %s128, %s129
      %p140 = scmp.eq.s32.totalorder %s26, 0
      %p141 = por %p139, %p140
      %p142 = scmp.ne.s32.totalorder %s128, %s129
      %p143 = scmp.eq.s32.totalorder %s27, 1
      %p144 = por %p142, %p143
      %p146 = scmp.ne.s32.totalorder %s129, %s145
      %p147 = scmp.eq.s32.totalorder %s27, 0
      %p148 = por %p146, %p147
      %s149 = ssub.s32 %s28, %s40
      %s150 = ssub.s32 %s29, %s36
      %s151 = sor.u32 %s149, %s150
      %p152 = scmp.eq.s32.totalorder %s151, 0
      %s154 = sadd.s32 %s153, 1
      %s155 = scalar_select %p152, %s153, %s154
      %p158 = pneg %p152
      %p159 = scmp.eq.s32.totalorder %s21, 1
      %p160 = por %p158, %p159
      %p161 = scmp.ne.s32.totalorder %s153, %s156
      %p162 = scmp.eq.s32.totalorder %s21, 0
      %p163 = por %p161, %p162
      %p164 = scmp.ne.s32.totalorder %s153, %s156
      %p165 = scmp.eq.s32.totalorder %s26, 1
      %p166 = por %p164, %p165
      %p167 = scmp.ne.s32.totalorder %s156, %s157
      %p168 = scmp.eq.s32.totalorder %s26, 0
      %p169 = por %p167, %p168
      %p170 = scmp.ne.s32.totalorder %s156, %s157
      %p171 = scmp.eq.s32.totalorder %s27, 1
      %p172 = por %p170, %p171
      %p174 = scmp.ne.s32.totalorder %s157, %s173
      %p175 = scmp.eq.s32.totalorder %s27, 0
      %p176 = por %p174, %p175
      %s177 = ssub.s32 %s28, %s40
      %p178 = scmp.eq.s32.totalorder %s177, 0
      %s180 = sadd.s32 %s179, 1
      %s181 = scalar_select %p178, %s179, %s180
      %p184 = pneg %p178
      %p185 = scmp.eq.s32.totalorder %s21, 1
      %p186 = por %p184, %p185
      %p187 = scmp.ne.s32.totalorder %s179, %s182
      %p188 = scmp.eq.s32.totalorder %s21, 0
      %p189 = por %p187, %p188
      %p190 = scmp.ne.s32.totalorder %s179, %s182
      %p191 = scmp.eq.s32.totalorder %s26, 1
      %p192 = por %p190, %p191
      %p193 = scmp.ne.s32.totalorder %s182, %s183
      %p194 = scmp.eq.s32.totalorder %s26, 0
      %p195 = por %p193, %p194
      %p196 = scmp.ne.s32.totalorder %s182, %s183
      %p197 = scmp.eq.s32.totalorder %s27, 1
      %p198 = por %p196, %p197
      %p200 = scmp.ne.s32.totalorder %s183, %s199
      %p201 = scmp.eq.s32.totalorder %s27, 0
      %p202 = por %p200, %p201
      %s203 = ssub.s32 %s28, %s40
      %s204 = ssub.s32 %s29, %s36
      %s205 = sor.u32 %s203, %s204
      %p206 = scmp.eq.s32.totalorder %s205, 0
      %s208 = sadd.s32 %s207, 1
      %s209 = scalar_select %p206, %s207, %s208
      %p212 = pneg %p206
      %p213 = scmp.eq.s32.totalorder %s21, 1
      %p214 = por %p212, %p213
      %p215 = scmp.ne.s32.totalorder %s207, %s210
      %p216 = scmp.eq.s32.totalorder %s21, 0
      %p217 = por %p215, %p216
      %p218 = scmp.ne.s32.totalorder %s207, %s210
      %p219 = scmp.eq.s32.totalorder %s26, 1
      %p220 = por %p218, %p219
      %p221 = scmp.ne.s32.totalorder %s210, %s211
      %p222 = scmp.eq.s32.totalorder %s26, 0
      %p223 = por %p221, %p222
      %p224 = scmp.ne.s32.totalorder %s210, %s211
      %p225 = scmp.eq.s32.totalorder %s27, 1
      %p226 = por %p224, %p225
      %p228 = scmp.ne.s32.totalorder %s211, %s227
      %p229 = scmp.eq.s32.totalorder %s27, 0
      %p230 = por %p228, %p229
      %p231 = scmp.le.s32.totalorder 1, %s21
      %p232 = scmp.lt.s32.totalorder %s21, 3
      %p233 = pnand %p231, %p232
      %p234 = pneg %p233
      // Predicated region
      $region9: #{tpu_custom_call.1} parent=5 // pred_check
        _
      $region10: #{tpu_custom_call.1} parent=5 // pred_check_branch
        %236 = sbr.rel (%p233) target = $region12
      $region11: #{tpu_custom_call.1} parent=5 // pred_region
        %s237 = ssub.s32 %s21, 1
      $region12: #{tpu_custom_call.1} parent=5 // pred_fallthru
        _
      %p238 = scmp.lt.s32.totalorder %s21, 2
      // Predicated region
      $region13: #{tpu_custom_call.1} parent=5 // pred_check
        %p239 = pneg %p238
      $region14: #{tpu_custom_call.1} parent=5 // pred_check_branch
        %241 = sbr.rel (%p239) target = $region16
      $region15: #{tpu_custom_call.1} parent=5 // pred_region
        // Predicated region
        $region17: #{tpu_custom_call.1} parent=15 // pred_check
          %p242 = pneg %p55
        $region18: #{tpu_custom_call.1} parent=15 // pred_check_branch
          %244 = sbr.rel (%p242) target = $region20
        $region19: #{tpu_custom_call.1} parent=15 // pred_region
          %s245 = sand.u32 %s45, 1
          %s246 = scalar_lea.sflag [#allocation3], %s245
          %s247 = sand.u32 %s45, 1
          %s248 = smul.addr %s247, 8
          %s249 = scalar_lea.vmem [#allocation2], %s248
          %s250 = smul.u32 2, %s29
          %s252 = ssub.s32 128, 128
          %253 = vsyncadd %s246, %s252
          %s254 = smul.addr %s28, 2
          %s255 = sadd.s32 %s250, %s254
          %s256 = smul.addr %s255, 64
          %s257 = scalar_lea.hbm %s0, %s256
          %s259 = sshll.u32 %s249, 4
          %s260 = int_to_ptr.vmem [resolvable:$true] %s259
          %262 = dma.hbm_to_vmem [thread:$0]  %s257, 128, %s260, %s246
        $region20: #{tpu_custom_call.1} parent=15 // pred_fallthru
          _
        // Predicated region
        $region21: #{tpu_custom_call.1} parent=15 // pred_check
          %p263 = pneg %p83
        $region22: #{tpu_custom_call.1} parent=15 // pred_check_branch
          %265 = sbr.rel (%p263) target = $region24
        $region23: #{tpu_custom_call.1} parent=15 // pred_region
          %s266 = sand.u32 %s73, 1
          %s267 = scalar_lea.sflag [#allocation6], %s266
          %s268 = sand.u32 %s73, 1
          %s269 = smul.addr %s268, 4
          %s270 = scalar_lea.vmem [#allocation5], %s269
          %s271 = smul.u32 2, %s29
          %s273 = ssub.s32 64, 64
          %274 = vsyncadd %s267, %s273
          %s275 = smul.addr %s28, 2
          %s276 = sadd.s32 %s271, %s275
          %s277 = smul.addr %s276, 32
          %s278 = scalar_lea.hbm %s1, %s277
          %s280 = sshll.u32 %s270, 4
          %s281 = int_to_ptr.vmem [resolvable:$true] %s280
          %283 = dma.hbm_to_vmem [thread:$0]  %s278, 64, %s281, %s267
        $region24: #{tpu_custom_call.1} parent=15 // pred_fallthru
          _
        // Predicated region
        $region25: #{tpu_custom_call.1} parent=15 // pred_check
          %p284 = pneg %p109
        $region26: #{tpu_custom_call.1} parent=15 // pred_check_branch
          %286 = sbr.rel (%p284) target = $region28
        $region27: #{tpu_custom_call.1} parent=15 // pred_region
          %p287 = scmp.lt.s32.totalorder %s28, 1
          %s288 = scalar_select %p287, %s28, 1
          %s289 = smul.addr %s288, 2
          %s290 = scalar_lea.vmem %s2, %s289
        $region28: #{tpu_custom_call.1} parent=15 // pred_fallthru
          _
        // Predicated region
        $region29: #{tpu_custom_call.1} parent=15 // pred_check
          %p291 = pneg %p135
        $region30: #{tpu_custom_call.1} parent=15 // pred_check_branch
          %293 = sbr.rel (%p291) target = $region32
        $region31: #{tpu_custom_call.1} parent=15 // pred_region
          %p294 = scmp.lt.s32.totalorder %s28, 1
          %s295 = scalar_select %p294, %s28, 1
          %s296 = scalar_lea.vmem %s3, %s295
        $region32: #{tpu_custom_call.1} parent=15 // pred_fallthru
          _
        // Predicated region
        $region33: #{tpu_custom_call.1} parent=15 // pred_check
          %p297 = pneg %p163
        $region34: #{tpu_custom_call.1} parent=15 // pred_check_branch
          %299 = sbr.rel (%p297) target = $region36
        $region35: #{tpu_custom_call.1} parent=15 // pred_region
          %s300 = smul.u32 2, %s29
          %p301 = scmp.lt.s32.totalorder %s28, 1
          %s302 = scalar_select %p301, %s28, 1
          %p303 = scmp.lt.s32.totalorder %s300, 1
          %s304 = scalar_select %p303, %s300, 1
          %s305 = smul.addr %s302, 2
          %s306 = sadd.s32 %s304, %s305
          %s307 = scalar_lea.vmem %s4, %s306
          %s308 = smul.u32 2, %s29
        $region36: #{tpu_custom_call.1} parent=15 // pred_fallthru
          _
        // Predicated region
        $region37: #{tpu_custom_call.1} parent=15 // pred_check
          %p309 = pneg %p189
        $region38: #{tpu_custom_call.1} parent=15 // pred_check_branch
          %311 = sbr.rel (%p309) target = $region40
        $region39: #{tpu_custom_call.1} parent=15 // pred_region
          %p312 = scmp.lt.s32.totalorder %s28, 1
          %s313 = scalar_select %p312, %s28, 1
          %s314 = scalar_lea.vmem %s5, %s313
        $region40: #{tpu_custom_call.1} parent=15 // pred_fallthru
          _
      $region16: #{tpu_custom_call.1} parent=5 // pred_fallthru
        _
      %p315 = scmp.le.s32.totalorder 1, %s21
      %p316 = scmp.lt.s32.totalorder %s21, 3
      %p317 = pnand %p315, %p316
      %p318 = pneg %p317
      // Predicated region
      $region41: #{tpu_custom_call.1} parent=5 // pred_check
        _
      $region42: #{tpu_custom_call.1} parent=5 // pred_check_branch
        %320 = sbr.rel (%p317) target = $region44
      $region43: #{tpu_custom_call.1} parent=5 // pred_region
        %s321 = ssub.s32 %s21, 1
        %s322 = sand.u32 %s48, 1
        %s323 = scalar_lea.sflag [#allocation3], %s322
        %s324 = sand.u32 %s48, 1
        %s325 = smul.addr %s324, 8
        %s326 = scalar_lea.vmem [#allocation2], %s325
        // Predicated region
        $region45: #{tpu_custom_call.1} parent=43 // pred_check
          %p327 = pneg %p61
        $region46: #{tpu_custom_call.1} parent=43 // pred_check_branch
          %329 = sbr.rel (%p327) target = $region48
        $region47: #{tpu_custom_call.1} parent=43 // pred_region
          %330 = dma.done %s323, 128
        $region48: #{tpu_custom_call.1} parent=43 // pred_fallthru
          _
        %s331 = sand.u32 %s76, 1
        %s332 = scalar_lea.sflag [#allocation6], %s331
        %s333 = sand.u32 %s76, 1
        %s334 = smul.addr %s333, 4
        %s335 = scalar_lea.vmem [#allocation5], %s334
        // Predicated region
        $region49: #{tpu_custom_call.1} parent=43 // pred_check
          %p336 = pneg %p89
        $region50: #{tpu_custom_call.1} parent=43 // pred_check_branch
          %338 = sbr.rel (%p336) target = $region52
        $region51: #{tpu_custom_call.1} parent=43 // pred_region
          %339 = dma.done %s332, 64
        $region52: #{tpu_custom_call.1} parent=43 // pred_fallthru
          _
        %s340 = sand.u32 %s48, 1
        %s341 = scalar_lea.sflag [#allocation3], %s340
        %s342 = sand.u32 %s48, 1
        %s343 = smul.addr %s342, 8
        %s344 = scalar_lea.vmem [#allocation2], %s343
        %p345 = pneg %p61
        %p346 = pneg %p58
        %s347 = sand.u32 %s76, 1
        %s348 = scalar_lea.sflag [#allocation6], %s347
        %s349 = sand.u32 %s76, 1
        %s350 = smul.addr %s349, 4
        %s351 = scalar_lea.vmem [#allocation5], %s350
        %p352 = pneg %p89
        %p353 = pneg %p86
        %p354 = scmp.lt.s32.totalorder %s30, 1
        %s355 = scalar_select %p354, %s30, 1
        %s356 = smul.addr %s355, 2
        %s357 = scalar_lea.vmem %s2, %s356
        %p358 = pneg %p115
        %p359 = pneg %p112
        %p360 = scmp.lt.s32.totalorder %s30, 1
        %s361 = scalar_select %p360, %s30, 1
        %s362 = scalar_lea.vmem %s3, %s361
        %p363 = pneg %p141
        %p364 = pneg %p138
        %s365 = smul.u32 2, %s31
        %p366 = scmp.lt.s32.totalorder %s30, 1
        %s367 = scalar_select %p366, %s30, 1
        %p368 = scmp.lt.s32.totalorder %s365, 1
        %s369 = scalar_select %p368, %s365, 1
        %s370 = smul.addr %s367, 2
        %s371 = sadd.s32 %s369, %s370
        %s372 = scalar_lea.vmem %s4, %s371
        %p373 = pneg %p169
        %p374 = pneg %p166
        %p375 = scmp.lt.s32.totalorder %s30, 1
        %s376 = scalar_select %p375, %s30, 1
        %s377 = scalar_lea.vmem %s5, %s376
        %p378 = pneg %p195
        %p379 = pneg %p192
        %p380 = pneg %p223
        %p381 = pneg %p220
        %s382 = sand.u32 %s210, 1
        %s383 = scalar_lea.sflag [#allocation4], %s382
        %s384 = sand.u32 %s210, 1
        %s385 = smul.addr %s384, 256
        %s386 = scalar_lea.vmem [#allocation7], %s385
        %s387 = smul.u32 2, %s31
        %s388 = smul.u32 2, %s31
        %p389 = scmp.lt.s32.totalorder %s30, 1
        %s390 = scalar_select %p389, %s30, 1
        %s391 = smul.addr %s390, 2
        %s392 = scalar_lea.vmem %s2, %s391
        %p393 = scmp.lt.s32.totalorder %s30, 1
        %s394 = scalar_select %p393, %s30, 1
        %s395 = scalar_lea.vmem %s3, %s394
        %s396 = smul.u32 2, %s31
        %p397 = scmp.lt.s32.totalorder %s30, 1
        %s398 = scalar_select %p397, %s30, 1
        %p399 = scmp.lt.s32.totalorder %s396, 1
        %s400 = scalar_select %p399, %s396, 1
        %s401 = smul.addr %s398, 2
        %s402 = sadd.s32 %s400, %s401
        %s403 = scalar_lea.vmem %s4, %s402
        %s404 = smul.u32 2, %s31
        %p405 = scmp.lt.s32.totalorder %s30, 1
        %s406 = scalar_select %p405, %s30, 1
        %s407 = scalar_lea.vmem %s5, %s406
        %s408 = smul.u32 32, %s31
        %v409 = vld [vmem:[%s326] sm:$0xff]
        %v410 = vxor.u32 %v409, 2147483648
        %v411 = vmul.f32 %v410, 1.442695
        %v412 = vpow.pop %v411
        %v413 = vadd.f32 %v412, 1.0
        %v414 = vrcp.pop %v413
        %v415 = vmul.f32 1.0, %v414
        %v416 = vsub.f32 1.0, %v415
        %v417 = vmul.f32 %v415, %v415
        %v418 = vmul.f32 %v417, 0.75
        %v419 = vadd.f32 %v416, 1e-08
        %v420 = vlog2.pop %v419
        %v421 = vmul.f32 %v420, 0.6931472
        %v422 = vsub.f32 0.0, %v421
        %v423 = vmul.f32 %v418, %v422
        %v424 = vmul.f32 %v416, %v416
        %v425 = vmul.f32 %v424, 0.25
        %v426 = vadd.f32 %v415, 1e-08
        %v427 = vlog2.pop %v426
        %v428 = vmul.f32 %v427, 0.6931472
        %v429 = vsub.f32 0.0, %v428
        %v430 = vmul.f32 %v425, %v429
        %v431 = vsub.f32 %v430, %v423
        %v432 = vld [vmem:[%s395] sm:$0x1]
        %v433 = vlaneseq
        %v434 = vshrl.u32 %v433, 7
        %v435 = vlaneseq
        %v436 = vshrl.u32 %v435, 7
        %v437 = vsub.s32 0, %v436
        %v438 = vrot.slane %v432, %v437
        %vm439 = vcmp.eq.s32.totalorder %v434, %v438
        %v440 = vsel %vm439, 1, 0
        %v441 = vcvt.s32.f32 %v440
        %v442 = vld [vmem:[%s403] sm:$0x3]
        %vm443 = vcmp.le.f32.partialorder %v442, 0.0
        %v444 = vsel %vm443, 1e+09, 0.0
        %v446 = vlaneseq
        %v447 = vshrl.u32 %v446, 7
        %v448 = vsub.s32 0, %v447
        %v449 = vrot.slane %v444, %v448
        %v450 = vlaneseq
        %v451 = vshrl.u32 %v450, 7
        %v452 = vsub.s32 1, %v451
        %v453 = vrot.slane %v444, %v452
        %456 = vxpose.xlu0.b32.start [1/16] %v449, 128
        %457 = vxpose.xlu0.b32.cont [2/16] 0.0, 128
        %458 = vxpose.xlu0.b32.cont [3/16] 0.0, 128
        %459 = vxpose.xlu0.b32.cont [4/16] 0.0, 128
        %460 = vxpose.xlu0.b32.cont [5/16] 0.0, 128
        %461 = vxpose.xlu0.b32.cont [6/16] 0.0, 128
        %462 = vxpose.xlu0.b32.cont [7/16] 0.0, 128
        %463 = vxpose.xlu0.b32.cont [8/16] 0.0, 128
        %464 = vxpose.xlu0.b32.cont [9/16] 0.0, 128
        %465 = vxpose.xlu0.b32.cont [10/16] 0.0, 128
        %466 = vxpose.xlu0.b32.cont [11/16] 0.0, 128
        %467 = vxpose.xlu0.b32.cont [12/16] 0.0, 128
        %468 = vxpose.xlu0.b32.cont [13/16] 0.0, 128
        %469 = vxpose.xlu0.b32.cont [14/16] 0.0, 128
        %470 = vxpose.xlu0.b32.cont [15/16] 0.0, 128
        %471 = vxpose.xlu0.b32.end [16/16] 0.0, 128
        %v472 = vpop.trf.xlu0
        %v473 = vpop.trf.xlu0
        %v474 = vpop.trf.xlu0
        %v475 = vpop.trf.xlu0
        %v476 = vpop.trf.xlu0
        %v477 = vpop.trf.xlu0
        %v478 = vpop.trf.xlu0
        %v479 = vpop.trf.xlu0
        %v480 = vpop.trf.xlu0
        %v481 = vpop.trf.xlu0
        %v482 = vpop.trf.xlu0
        %v483 = vpop.trf.xlu0
        %v484 = vpop.trf.xlu0
        %v485 = vpop.trf.xlu0
        %v486 = vpop.trf.xlu0
        %v487 = vpop.trf.xlu0
        %488 = vxpose.xlu0.b32.start [1/16] %v453, 128
        %489 = vxpose.xlu0.b32.cont [2/16] 0.0, 128
        %490 = vxpose.xlu0.b32.cont [3/16] 0.0, 128
        %491 = vxpose.xlu0.b32.cont [4/16] 0.0, 128
        %492 = vxpose.xlu0.b32.cont [5/16] 0.0, 128
        %493 = vxpose.xlu0.b32.cont [6/16] 0.0, 128
        %494 = vxpose.xlu0.b32.cont [7/16] 0.0, 128
        %495 = vxpose.xlu0.b32.cont [8/16] 0.0, 128
        %496 = vxpose.xlu0.b32.cont [9/16] 0.0, 128
        %497 = vxpose.xlu0.b32.cont [10/16] 0.0, 128
        %498 = vxpose.xlu0.b32.cont [11/16] 0.0, 128
        %499 = vxpose.xlu0.b32.cont [12/16] 0.0, 128
        %500 = vxpose.xlu0.b32.cont [13/16] 0.0, 128
        %501 = vxpose.xlu0.b32.cont [14/16] 0.0, 128
        %502 = vxpose.xlu0.b32.cont [15/16] 0.0, 128
        %503 = vxpose.xlu0.b32.end [16/16] 0.0, 128
        %v504 = vpop.trf.xlu0
        %v505 = vpop.trf.xlu0
        %v506 = vpop.trf.xlu0
        %v507 = vpop.trf.xlu0
        %v508 = vpop.trf.xlu0
        %v509 = vpop.trf.xlu0
        %v510 = vpop.trf.xlu0
        %v511 = vpop.trf.xlu0
        %v512 = vpop.trf.xlu0
        %v513 = vpop.trf.xlu0
        %v514 = vpop.trf.xlu0
        %v515 = vpop.trf.xlu0
        %v516 = vpop.trf.xlu0
        %v517 = vpop.trf.xlu0
        %v518 = vpop.trf.xlu0
        %v519 = vpop.trf.xlu0
        %v520 = vld [vmem:[%s407] sm:$0x1]
        %v521 = vrcp.pop %v520
        %v522 = vmul.f32 1.0, %v521
        %v523 = vld [vmem:[%s335] sm:$0xf]
        %v524 = vld [vmem:[%s392] sm:$0x3]
        %526 = vset.pattern.permute.xlu0 0
        %527 = vperm.xlu0 %526, %v522
        %v528 = vpop.permute.xlu0 %527
        %v530 = vlaneseq
        %v531 = vshrl.u32 %v530, 7
        %v532 = vsub.s32 0, %v531
        %v533 = vrot.slane %v528, %v532
        %v534 = vmul.f32 %v523, %v533
        %v536 = vlaneseq
        %v537 = vshrl.u32 %v536, 7
        %v538 = vsub.s32 0, %v537
        %v539 = vrot.slane %v534, %v538
        %v540 = vlaneseq
        %v541 = vshrl.u32 %v540, 7
        %v542 = vsub.s32 2, %v541
        %v543 = vrot.slane %v534, %v542
        %546 = vxpose.xlu0.b32.start [1/16] %v539, 128
        %547 = vxpose.xlu0.b32.cont [2/16] 0.0, 128
        %548 = vxpose.xlu0.b32.cont [3/16] 0.0, 128
        %549 = vxpose.xlu0.b32.cont [4/16] 0.0, 128
        %550 = vxpose.xlu0.b32.cont [5/16] 0.0, 128
        %551 = vxpose.xlu0.b32.cont [6/16] 0.0, 128
        %552 = vxpose.xlu0.b32.cont [7/16] 0.0, 128
        %553 = vxpose.xlu0.b32.cont [8/16] 0.0, 128
        %554 = vxpose.xlu0.b32.cont [9/16] 0.0, 128
        %555 = vxpose.xlu0.b32.cont [10/16] 0.0, 128
        %556 = vxpose.xlu0.b32.cont [11/16] 0.0, 128
        %557 = vxpose.xlu0.b32.cont [12/16] 0.0, 128
        %558 = vxpose.xlu0.b32.cont [13/16] 0.0, 128
        %559 = vxpose.xlu0.b32.cont [14/16] 0.0, 128
        %560 = vxpose.xlu0.b32.cont [15/16] 0.0, 128
        %561 = vxpose.xlu0.b32.end [16/16] 0.0, 128
        %v562 = vpop.trf.xlu0
        %v563 = vpop.trf.xlu0
        %v564 = vpop.trf.xlu0
        %v565 = vpop.trf.xlu0
        %v566 = vpop.trf.xlu0
        %v567 = vpop.trf.xlu0
        %v568 = vpop.trf.xlu0
        %v569 = vpop.trf.xlu0
        %v570 = vpop.trf.xlu0
        %v571 = vpop.trf.xlu0
        %v572 = vpop.trf.xlu0
        %v573 = vpop.trf.xlu0
        %v574 = vpop.trf.xlu0
        %v575 = vpop.trf.xlu0
        %v576 = vpop.trf.xlu0
        %v577 = vpop.trf.xlu0
        %578 = vxpose.xlu0.b32.start [1/16] %v543, 128
        %579 = vxpose.xlu0.b32.cont [2/16] 0.0, 128
        %580 = vxpose.xlu0.b32.cont [3/16] 0.0, 128
        %581 = vxpose.xlu0.b32.cont [4/16] 0.0, 128
        %582 = vxpose.xlu0.b32.cont [5/16] 0.0, 128
        %583 = vxpose.xlu0.b32.cont [6/16] 0.0, 128
        %584 = vxpose.xlu0.b32.cont [7/16] 0.0, 128
        %585 = vxpose.xlu0.b32.cont [8/16] 0.0, 128
        %586 = vxpose.xlu0.b32.cont [9/16] 0.0, 128
        %587 = vxpose.xlu0.b32.cont [10/16] 0.0, 128
        %588 = vxpose.xlu0.b32.cont [11/16] 0.0, 128
        %589 = vxpose.xlu0.b32.cont [12/16] 0.0, 128
        %590 = vxpose.xlu0.b32.cont [13/16] 0.0, 128
        %591 = vxpose.xlu0.b32.cont [14/16] 0.0, 128
        %592 = vxpose.xlu0.b32.cont [15/16] 0.0, 128
        %593 = vxpose.xlu0.b32.end [16/16] 0.0, 128
        %v594 = vpop.trf.xlu0
        %v595 = vpop.trf.xlu0
        %v596 = vpop.trf.xlu0
        %v597 = vpop.trf.xlu0
        %v598 = vpop.trf.xlu0
        %v599 = vpop.trf.xlu0
        %v600 = vpop.trf.xlu0
        %v601 = vpop.trf.xlu0
        %v602 = vpop.trf.xlu0
        %v603 = vpop.trf.xlu0
        %v604 = vpop.trf.xlu0
        %v605 = vpop.trf.xlu0
        %v606 = vpop.trf.xlu0
        %v607 = vpop.trf.xlu0
        %v608 = vpop.trf.xlu0
        %v609 = vpop.trf.xlu0
        %v610 = vadd.f32 %v562, %v472
        %v611 = vadd.f32 %v563, %v473
        %v612 = vadd.f32 %v564, %v474
        %v613 = vadd.f32 %v565, %v475
        %v614 = vadd.f32 %v566, %v476
        %v615 = vadd.f32 %v567, %v477
        %v616 = vadd.f32 %v568, %v478
        %v617 = vadd.f32 %v569, %v479
        %v618 = vadd.f32 %v570, %v480
        %v619 = vadd.f32 %v571, %v481
        %v620 = vadd.f32 %v572, %v482
        %v621 = vadd.f32 %v573, %v483
        %v622 = vadd.f32 %v574, %v484
        %v623 = vadd.f32 %v575, %v485
        %v624 = vadd.f32 %v576, %v486
        %v625 = vadd.f32 %v577, %v487
        %v626 = vadd.f32 %v594, %v504
        %v627 = vadd.f32 %v595, %v505
        %v628 = vadd.f32 %v596, %v506
        %v629 = vadd.f32 %v597, %v507
        %v630 = vadd.f32 %v598, %v508
        %v631 = vadd.f32 %v599, %v509
        %v632 = vadd.f32 %v600, %v510
        %v633 = vadd.f32 %v601, %v511
        %v634 = vadd.f32 %v602, %v512
        %v635 = vadd.f32 %v603, %v513
        %v636 = vadd.f32 %v604, %v514
        %v637 = vadd.f32 %v605, %v515
        %v638 = vadd.f32 %v606, %v516
        %v639 = vadd.f32 %v607, %v517
        %v640 = vadd.f32 %v608, %v518
        %v641 = vadd.f32 %v609, %v519
        %v642 = vmul.f32 %v524, %v533
        %644 = vset.pattern.permute.xlu0 0
        %645 = vperm.xlu0 %644, %v610
        %v646 = vpop.permute.xlu0 %645
        %649 = vset.pattern.permute.xlu0 0
        %650 = vperm.xlu0 %649, %v611
        %v651 = vpop.permute.xlu0 %650
        %654 = vset.pattern.permute.xlu0 0
        %655 = vperm.xlu0 %654, %v612
        %v656 = vpop.permute.xlu0 %655
        %659 = vset.pattern.permute.xlu0 0
        %660 = vperm.xlu0 %659, %v613
        %v661 = vpop.permute.xlu0 %660
        %664 = vset.pattern.permute.xlu0 0
        %665 = vperm.xlu0 %664, %v614
        %v666 = vpop.permute.xlu0 %665
        %669 = vset.pattern.permute.xlu0 0
        %670 = vperm.xlu0 %669, %v615
        %v671 = vpop.permute.xlu0 %670
        %674 = vset.pattern.permute.xlu0 0
        %675 = vperm.xlu0 %674, %v616
        %v676 = vpop.permute.xlu0 %675
        %679 = vset.pattern.permute.xlu0 0
        %680 = vperm.xlu0 %679, %v617
        %v681 = vpop.permute.xlu0 %680
        %684 = vset.pattern.permute.xlu0 0
        %685 = vperm.xlu0 %684, %v618
        %v686 = vpop.permute.xlu0 %685
        %689 = vset.pattern.permute.xlu0 0
        %690 = vperm.xlu0 %689, %v619
        %v691 = vpop.permute.xlu0 %690
        %694 = vset.pattern.permute.xlu0 0
        %695 = vperm.xlu0 %694, %v620
        %v696 = vpop.permute.xlu0 %695
        %699 = vset.pattern.permute.xlu0 0
        %700 = vperm.xlu0 %699, %v621
        %v701 = vpop.permute.xlu0 %700
        %704 = vset.pattern.permute.xlu0 0
        %705 = vperm.xlu0 %704, %v622
        %v706 = vpop.permute.xlu0 %705
        %709 = vset.pattern.permute.xlu0 0
        %710 = vperm.xlu0 %709, %v623
        %v711 = vpop.permute.xlu0 %710
        %714 = vset.pattern.permute.xlu0 0
        %715 = vperm.xlu0 %714, %v624
        %v716 = vpop.permute.xlu0 %715
        %719 = vset.pattern.permute.xlu0 0
        %720 = vperm.xlu0 %719, %v625
        %v721 = vpop.permute.xlu0 %720
        %724 = vset.pattern.permute.xlu0 0
        %725 = vperm.xlu0 %724, %v626
        %v726 = vpop.permute.xlu0 %725
        %729 = vset.pattern.permute.xlu0 0
        %730 = vperm.xlu0 %729, %v627
        %v731 = vpop.permute.xlu0 %730
        %734 = vset.pattern.permute.xlu0 0
        %735 = vperm.xlu0 %734, %v628
        %v736 = vpop.permute.xlu0 %735
        %739 = vset.pattern.permute.xlu0 0
        %740 = vperm.xlu0 %739, %v629
        %v741 = vpop.permute.xlu0 %740
        %744 = vset.pattern.permute.xlu0 0
        %745 = vperm.xlu0 %744, %v630
        %v746 = vpop.permute.xlu0 %745
        %749 = vset.pattern.permute.xlu0 0
        %750 = vperm.xlu0 %749, %v631
        %v751 = vpop.permute.xlu0 %750
        %754 = vset.pattern.permute.xlu0 0
        %755 = vperm.xlu0 %754, %v632
        %v756 = vpop.permute.xlu0 %755
        %759 = vset.pattern.permute.xlu0 0
        %760 = vperm.xlu0 %759, %v633
        %v761 = vpop.permute.xlu0 %760
        %764 = vset.pattern.permute.xlu0 0
        %765 = vperm.xlu0 %764, %v634
        %v766 = vpop.permute.xlu0 %765
        %769 = vset.pattern.permute.xlu0 0
        %770 = vperm.xlu0 %769, %v635
        %v771 = vpop.permute.xlu0 %770
        %774 = vset.pattern.permute.xlu0 0
        %775 = vperm.xlu0 %774, %v636
        %v776 = vpop.permute.xlu0 %775
        %779 = vset.pattern.permute.xlu0 0
        %780 = vperm.xlu0 %779, %v637
        %v781 = vpop.permute.xlu0 %780
        %784 = vset.pattern.permute.xlu0 0
        %785 = vperm.xlu0 %784, %v638
        %v786 = vpop.permute.xlu0 %785
        %789 = vset.pattern.permute.xlu0 0
        %790 = vperm.xlu0 %789, %v639
        %v791 = vpop.permute.xlu0 %790
        %794 = vset.pattern.permute.xlu0 0
        %795 = vperm.xlu0 %794, %v640
        %v796 = vpop.permute.xlu0 %795
        %799 = vset.pattern.permute.xlu0 0
        %800 = vperm.xlu0 %799, %v641
        %v801 = vpop.permute.xlu0 %800
        %v803 = vlaneseq
        %v804 = vshrl.u32 %v803, 7
        %v805 = vsub.s32 0, %v804
        %v806 = vrot.slane %v642, %v805
        %v807 = vsub.f32 %v646, %v806
        %v808 = vsub.f32 %v651, %v806
        %v809 = vsub.f32 %v656, %v806
        %v810 = vsub.f32 %v661, %v806
        %v811 = vsub.f32 %v666, %v806
        %v812 = vsub.f32 %v671, %v806
        %v813 = vsub.f32 %v676, %v806
        %v814 = vsub.f32 %v681, %v806
        %v815 = vsub.f32 %v686, %v806
        %v816 = vsub.f32 %v691, %v806
        %v817 = vsub.f32 %v696, %v806
        %v818 = vsub.f32 %v701, %v806
        %v819 = vsub.f32 %v706, %v806
        %v820 = vsub.f32 %v711, %v806
        %v821 = vsub.f32 %v716, %v806
        %v822 = vsub.f32 %v721, %v806
        %v823 = vsub.f32 %v726, %v806
        %v824 = vsub.f32 %v731, %v806
        %v825 = vsub.f32 %v736, %v806
        %v826 = vsub.f32 %v741, %v806
        %v827 = vsub.f32 %v746, %v806
        %v828 = vsub.f32 %v751, %v806
        %v829 = vsub.f32 %v756, %v806
        %v830 = vsub.f32 %v761, %v806
        %v831 = vsub.f32 %v766, %v806
        %v832 = vsub.f32 %v771, %v806
        %v833 = vsub.f32 %v776, %v806
        %v834 = vsub.f32 %v781, %v806
        %v835 = vsub.f32 %v786, %v806
        %v836 = vsub.f32 %v791, %v806
        %v837 = vsub.f32 %v796, %v806
        %v838 = vsub.f32 %v801, %v806
        %v839 = vand.u32 2147483647, %v807
        %v840 = vand.u32 2147483647, %v808
        %v841 = vand.u32 2147483647, %v809
        %v842 = vand.u32 2147483647, %v810
        %v843 = vand.u32 2147483647, %v811
        %v844 = vand.u32 2147483647, %v812
        %v845 = vand.u32 2147483647, %v813
        %v846 = vand.u32 2147483647, %v814
        %v847 = vand.u32 2147483647, %v815
        %v848 = vand.u32 2147483647, %v816
        %v849 = vand.u32 2147483647, %v817
        %v850 = vand.u32 2147483647, %v818
        %v851 = vand.u32 2147483647, %v819
        %v852 = vand.u32 2147483647, %v820
        %v853 = vand.u32 2147483647, %v821
        %v854 = vand.u32 2147483647, %v822
        %v855 = vand.u32 2147483647, %v823
        %v856 = vand.u32 2147483647, %v824
        %v857 = vand.u32 2147483647, %v825
        %v858 = vand.u32 2147483647, %v826
        %v859 = vand.u32 2147483647, %v827
        %v860 = vand.u32 2147483647, %v828
        %v861 = vand.u32 2147483647, %v829
        %v862 = vand.u32 2147483647, %v830
        %v863 = vand.u32 2147483647, %v831
        %v864 = vand.u32 2147483647, %v832
        %v865 = vand.u32 2147483647, %v833
        %v866 = vand.u32 2147483647, %v834
        %v867 = vand.u32 2147483647, %v835
        %v868 = vand.u32 2147483647, %v836
        %v869 = vand.u32 2147483647, %v837
        %v870 = vand.u32 2147483647, %v838
        %v872 = vcombine.high %v431, %v431
        %874 = vxpose.xlu0.b32.start [1/16] %v431, 128
        %875 = vxpose.xlu0.b32.cont [2/16] 0.0, 128
        %876 = vxpose.xlu0.b32.cont [3/16] 0.0, 128
        %877 = vxpose.xlu0.b32.cont [4/16] 0.0, 128
        %878 = vxpose.xlu0.b32.cont [5/16] 0.0, 128
        %879 = vxpose.xlu0.b32.cont [6/16] 0.0, 128
        %880 = vxpose.xlu0.b32.cont [7/16] 0.0, 128
        %881 = vxpose.xlu0.b32.cont [8/16] 0.0, 128
        %882 = vxpose.xlu0.b32.cont [9/16] 0.0, 128
        %883 = vxpose.xlu0.b32.cont [10/16] 0.0, 128
        %884 = vxpose.xlu0.b32.cont [11/16] 0.0, 128
        %885 = vxpose.xlu0.b32.cont [12/16] 0.0, 128
        %886 = vxpose.xlu0.b32.cont [13/16] 0.0, 128
        %887 = vxpose.xlu0.b32.cont [14/16] 0.0, 128
        %888 = vxpose.xlu0.b32.cont [15/16] 0.0, 128
        %889 = vxpose.xlu0.b32.end [16/16] 0.0, 128
        %v890 = vpop.trf.xlu0
        %v891 = vpop.trf.xlu0
        %v892 = vpop.trf.xlu0
        %v893 = vpop.trf.xlu0
        %v894 = vpop.trf.xlu0
        %v895 = vpop.trf.xlu0
        %v896 = vpop.trf.xlu0
        %v897 = vpop.trf.xlu0
        %v898 = vpop.trf.xlu0
        %v899 = vpop.trf.xlu0
        %v900 = vpop.trf.xlu0
        %v901 = vpop.trf.xlu0
        %v902 = vpop.trf.xlu0
        %v903 = vpop.trf.xlu0
        %v904 = vpop.trf.xlu0
        %v905 = vpop.trf.xlu0
        %906 = vxpose.xlu0.b32.start [1/16] %v872, 128
        %907 = vxpose.xlu0.b32.cont [2/16] 0.0, 128
        %908 = vxpose.xlu0.b32.cont [3/16] 0.0, 128
        %909 = vxpose.xlu0.b32.cont [4/16] 0.0, 128
        %910 = vxpose.xlu0.b32.cont [5/16] 0.0, 128
        %911 = vxpose.xlu0.b32.cont [6/16] 0.0, 128
        %912 = vxpose.xlu0.b32.cont [7/16] 0.0, 128
        %913 = vxpose.xlu0.b32.cont [8/16] 0.0, 128
        %914 = vxpose.xlu0.b32.cont [9/16] 0.0, 128
        %915 = vxpose.xlu0.b32.cont [10/16] 0.0, 128
        %916 = vxpose.xlu0.b32.cont [11/16] 0.0, 128
        %917 = vxpose.xlu0.b32.cont [12/16] 0.0, 128
        %918 = vxpose.xlu0.b32.cont [13/16] 0.0, 128
        %919 = vxpose.xlu0.b32.cont [14/16] 0.0, 128
        %920 = vxpose.xlu0.b32.cont [15/16] 0.0, 128
        %921 = vxpose.xlu0.b32.end [16/16] 0.0, 128
        %v922 = vpop.trf.xlu0
        %v923 = vpop.trf.xlu0
        %v924 = vpop.trf.xlu0
        %v925 = vpop.trf.xlu0
        %v926 = vpop.trf.xlu0
        %v927 = vpop.trf.xlu0
        %v928 = vpop.trf.xlu0
        %v929 = vpop.trf.xlu0
        %v930 = vpop.trf.xlu0
        %v931 = vpop.trf.xlu0
        %v932 = vpop.trf.xlu0
        %v933 = vpop.trf.xlu0
        %v934 = vpop.trf.xlu0
        %v935 = vpop.trf.xlu0
        %v936 = vpop.trf.xlu0
        %v937 = vpop.trf.xlu0
        %vm938 = vcmask 31744
        %v940 = vsel %vm938, %v890, 0
        %v943 = vsel %vm938, %v891, 0
        %v946 = vsel %vm938, %v892, 0
        %v949 = vsel %vm938, %v893, 0
        %v952 = vsel %vm938, %v894, 0
        %v955 = vsel %vm938, %v895, 0
        %v958 = vsel %vm938, %v896, 0
        %v961 = vsel %vm938, %v897, 0
        %v964 = vsel %vm938, %v898, 0
        %v967 = vsel %vm938, %v899, 0
        %v970 = vsel %vm938, %v900, 0
        %v973 = vsel %vm938, %v901, 0
        %v976 = vsel %vm938, %v902, 0
        %v979 = vsel %vm938, %v903, 0
        %v982 = vsel %vm938, %v904, 0
        %v985 = vsel %vm938, %v905, 0
        %v988 = vsel %vm938, %v922, 0
        %v991 = vsel %vm938, %v923, 0
        %v994 = vsel %vm938, %v924, 0
        %v997 = vsel %vm938, %v925, 0
        %v1000 = vsel %vm938, %v926, 0
        %v1003 = vsel %vm938, %v927, 0
        %v1006 = vsel %vm938, %v928, 0
        %v1009 = vsel %vm938, %v929, 0
        %v1012 = vsel %vm938, %v930, 0
        %v1015 = vsel %vm938, %v931, 0
        %v1018 = vsel %vm938, %v932, 0
        %v1021 = vsel %vm938, %v933, 0
        %v1024 = vsel %vm938, %v934, 0
        %v1027 = vsel %vm938, %v935, 0
        %v1030 = vsel %vm938, %v936, 0
        %v1033 = vsel %vm938, %v937, 0
        %vm1035 = vcmask 1043456
        %v1037 = vsel %vm1035, %v441, 0
        %1039 = vmatprep.subr.mxu0 0.0
        %1040 = vmatpush1.msra.mxu0 %v1037
        %1041 = vmatprep.subr.mxu0 0.0
        %1042 = vmatpush1.msra.mxu0 0.0
        %1043 = vmatprep.subr.mxu0 0.0
        %1044 = vmatpush1.msra.mxu0 0.0
        %1045 = vmatprep.subr.mxu0 0.0
        %1046 = vmatpush1.msra.mxu0 0.0
        %1047 = vmatprep.subr.mxu0 0.0
        %1048 = vmatpush1.msra.mxu0 0.0
        %1049 = vmatprep.subr.mxu0 0.0
        %1050 = vmatpush1.msra.mxu0 0.0
        %1051 = vmatprep.subr.mxu0 0.0
        %1052 = vmatpush1.msra.mxu0 0.0
        %1053 = vmatprep.subr.mxu0 0.0
        %1054 = vmatpush1.msra.mxu0 0.0
        %1055 = vmatprep.subr.mxu0 0.0
        %1056 = vmatpush1.msra.mxu0 0.0
        %1057 = vmatprep.subr.mxu0 0.0
        %1058 = vmatpush1.msra.mxu0 0.0
        %1059 = vmatprep.subr.mxu0 0.0
        %1060 = vmatpush1.msra.mxu0 0.0
        %1061 = vmatprep.subr.mxu0 0.0
        %1062 = vmatpush1.msra.mxu0 0.0
        %1063 = vmatprep.subr.mxu0 0.0
        %1064 = vmatpush1.msra.mxu0 0.0
        %1065 = vmatprep.subr.mxu0 0.0
        %1066 = vmatpush1.msra.mxu0 0.0
        %1067 = vmatprep.subr.mxu0 0.0
        %1068 = vmatpush1.msra.mxu0 0.0
        %1069 = vmatprep.subr.mxu0 0.0
        %1070 = vmatpush1.msra.mxu0 0.0
        %1071 = vmatprep.subr.mxu0 0.0
        %1072 = vmatpush1.msra.mxu0 0.0
        %1073 = vmatprep.subr.mxu0 0.0
        %1074 = vmatpush1.msra.mxu0 0.0
        %1075 = vmatprep.subr.mxu0 0.0
        %1076 = vmatpush1.msra.mxu0 0.0
        %1077 = vmatprep.subr.mxu0 0.0
        %1078 = vmatpush1.msra.mxu0 0.0
        %1079 = vmatprep.subr.mxu0 0.0
        %1080 = vmatpush1.msra.mxu0 0.0
        %1081 = vmatprep.subr.mxu0 0.0
        %1082 = vmatpush1.msra.mxu0 0.0
        %1083 = vmatprep.subr.mxu0 0.0
        %1084 = vmatpush1.msra.mxu0 0.0
        %1085 = vmatprep.subr.mxu0 0.0
        %1086 = vmatpush1.msra.mxu0 0.0
        %1087 = vmatprep.subr.mxu0 0.0
        %1088 = vmatpush1.msra.mxu0 0.0
        %1089 = vmatprep.subr.mxu0 0.0
        %1090 = vmatpush1.msra.mxu0 0.0
        %1091 = vmatprep.subr.mxu0 0.0
        %1092 = vmatpush1.msra.mxu0 0.0
        %1093 = vmatprep.subr.mxu0 0.0
        %1094 = vmatpush1.msra.mxu0 0.0
        %1095 = vmatprep.subr.mxu0 0.0
        %1096 = vmatpush1.msra.mxu0 0.0
        %1097 = vmatprep.subr.mxu0 0.0
        %1098 = vmatpush1.msra.mxu0 0.0
        %1099 = vmatprep.subr.mxu0 0.0
        %1100 = vmatpush1.msra.mxu0 0.0
        %1101 = vmatprep.subr.mxu0 0.0
        %1102 = vmatpush1.msra.mxu0 0.0
        %1103 = vmatprep.mubr.f32.mxu0 0.0
        %1104 = vmatmul.mubr.f32.gmra.mrb[0].mxu0 %v940
        %v1105 = vpop.f32.mrb[0].mxu0
        %v1106 = vadd.f32 %v839, %v1105
        %v1107 = vpop.f32.mrb[0].mxu0
        %1108 = vmatprep.mubr.f32.mxu0 0.0
        %1109 = vmatmul.mubr.f32.gmra.mrb[0].mxu0 %v943
        %v1110 = vpop.f32.mrb[0].mxu0
        %v1111 = vadd.f32 %v840, %v1110
        %v1112 = vpop.f32.mrb[0].mxu0
        %1113 = vmatprep.mubr.f32.mxu0 0.0
        %1114 = vmatmul.mubr.f32.gmra.mrb[0].mxu0 %v946
        %v1115 = vpop.f32.mrb[0].mxu0
        %v1116 = vadd.f32 %v841, %v1115
        %v1117 = vpop.f32.mrb[0].mxu0
        %1118 = vmatprep.mubr.f32.mxu0 0.0
        %1119 = vmatmul.mubr.f32.gmra.mrb[0].mxu0 %v949
        %v1120 = vpop.f32.mrb[0].mxu0
        %v1121 = vadd.f32 %v842, %v1120
        %v1122 = vpop.f32.mrb[0].mxu0
        %1123 = vmatprep.mubr.f32.mxu0 0.0
        %1124 = vmatmul.mubr.f32.gmra.mrb[0].mxu0 %v952
        %v1125 = vpop.f32.mrb[0].mxu0
        %v1126 = vadd.f32 %v843, %v1125
        %v1127 = vpop.f32.mrb[0].mxu0
        %1128 = vmatprep.mubr.f32.mxu0 0.0
        %1129 = vmatmul.mubr.f32.gmra.mrb[0].mxu0 %v955
        %v1130 = vpop.f32.mrb[0].mxu0
        %v1131 = vadd.f32 %v844, %v1130
        %v1132 = vpop.f32.mrb[0].mxu0
        %1133 = vmatprep.mubr.f32.mxu0 0.0
        %1134 = vmatmul.mubr.f32.gmra.mrb[0].mxu0 %v958
        %v1135 = vpop.f32.mrb[0].mxu0
        %v1136 = vadd.f32 %v845, %v1135
        %v1137 = vpop.f32.mrb[0].mxu0
        %1138 = vmatprep.mubr.f32.mxu0 0.0
        %1139 = vmatmul.mubr.f32.gmra.mrb[0].mxu0 %v961
        %v1140 = vpop.f32.mrb[0].mxu0
        %v1141 = vadd.f32 %v846, %v1140
        %v1142 = vpop.f32.mrb[0].mxu0
        %1143 = vmatprep.mubr.f32.mxu0 0.0
        %1144 = vmatmul.mubr.f32.gmra.mrb[0].mxu0 %v964
        %v1145 = vpop.f32.mrb[0].mxu0
        %v1146 = vadd.f32 %v847, %v1145
        %v1147 = vpop.f32.mrb[0].mxu0
        %1148 = vmatprep.mubr.f32.mxu0 0.0
        %1149 = vmatmul.mubr.f32.gmra.mrb[0].mxu0 %v967
        %v1150 = vpop.f32.mrb[0].mxu0
        %v1151 = vadd.f32 %v848, %v1150
        %v1152 = vpop.f32.mrb[0].mxu0
        %1153 = vmatprep.mubr.f32.mxu0 0.0
        %1154 = vmatmul.mubr.f32.gmra.mrb[0].mxu0 %v970
        %v1155 = vpop.f32.mrb[0].mxu0
        %v1156 = vadd.f32 %v849, %v1155
        %v1157 = vpop.f32.mrb[0].mxu0
        %1158 = vmatprep.mubr.f32.mxu0 0.0
        %1159 = vmatmul.mubr.f32.gmra.mrb[0].mxu0 %v973
        %v1160 = vpop.f32.mrb[0].mxu0
        %v1161 = vadd.f32 %v850, %v1160
        %v1162 = vpop.f32.mrb[0].mxu0
        %1163 = vmatprep.mubr.f32.mxu0 0.0
        %1164 = vmatmul.mubr.f32.gmra.mrb[0].mxu0 %v976
        %v1165 = vpop.f32.mrb[0].mxu0
        %v1166 = vadd.f32 %v851, %v1165
        %v1167 = vpop.f32.mrb[0].mxu0
        %1168 = vmatprep.mubr.f32.mxu0 0.0
        %1169 = vmatmul.mubr.f32.gmra.mrb[0].mxu0 %v979
        %v1170 = vpop.f32.mrb[0].mxu0
        %v1171 = vadd.f32 %v852, %v1170
        %v1172 = vpop.f32.mrb[0].mxu0
        %1173 = vmatprep.mubr.f32.mxu0 0.0
        %1174 = vmatmul.mubr.f32.gmra.mrb[0].mxu0 %v982
        %v1175 = vpop.f32.mrb[0].mxu0
        %v1176 = vadd.f32 %v853, %v1175
        %v1177 = vpop.f32.mrb[0].mxu0
        %1178 = vmatprep.mubr.f32.mxu0 0.0
        %1179 = vmatmul.mubr.f32.gmra.mrb[0].mxu0 %v985
        %v1180 = vpop.f32.mrb[0].mxu0
        %v1181 = vadd.f32 %v854, %v1180
        %v1182 = vpop.f32.mrb[0].mxu0
        %1183 = vmatprep.mubr.f32.mxu0 0.0
        %1184 = vmatmul.mubr.f32.gmra.mrb[0].mxu0 %v988
        %v1185 = vpop.f32.mrb[0].mxu0
        %v1186 = vadd.f32 %v855, %v1185
        %v1187 = vpop.f32.mrb[0].mxu0
        %1188 = vmatprep.mubr.f32.mxu0 0.0
        %1189 = vmatmul.mubr.f32.gmra.mrb[0].mxu0 %v991
        %v1190 = vpop.f32.mrb[0].mxu0
        %v1191 = vadd.f32 %v856, %v1190
        %v1192 = vpop.f32.mrb[0].mxu0
        %1193 = vmatprep.mubr.f32.mxu0 0.0
        %1194 = vmatmul.mubr.f32.gmra.mrb[0].mxu0 %v994
        %v1195 = vpop.f32.mrb[0].mxu0
        %v1196 = vadd.f32 %v857, %v1195
        %v1197 = vpop.f32.mrb[0].mxu0
        %1198 = vmatprep.mubr.f32.mxu0 0.0
        %1199 = vmatmul.mubr.f32.gmra.mrb[0].mxu0 %v997
        %v1200 = vpop.f32.mrb[0].mxu0
        %v1201 = vadd.f32 %v858, %v1200
        %v1202 = vpop.f32.mrb[0].mxu0
        %1203 = vmatprep.mubr.f32.mxu0 0.0
        %1204 = vmatmul.mubr.f32.gmra.mrb[0].mxu0 %v1000
        %v1205 = vpop.f32.mrb[0].mxu0
        %v1206 = vadd.f32 %v859, %v1205
        %v1207 = vpop.f32.mrb[0].mxu0
        %1208 = vmatprep.mubr.f32.mxu0 0.0
        %1209 = vmatmul.mubr.f32.gmra.mrb[0].mxu0 %v1003
        %v1210 = vpop.f32.mrb[0].mxu0
        %v1211 = vadd.f32 %v860, %v1210
        %v1212 = vpop.f32.mrb[0].mxu0
        %1213 = vmatprep.mubr.f32.mxu0 0.0
        %1214 = vmatmul.mubr.f32.gmra.mrb[0].mxu0 %v1006
        %v1215 = vpop.f32.mrb[0].mxu0
        %v1216 = vadd.f32 %v861, %v1215
        %v1217 = vpop.f32.mrb[0].mxu0
        %1218 = vmatprep.mubr.f32.mxu0 0.0
        %1219 = vmatmul.mubr.f32.gmra.mrb[0].mxu0 %v1009
        %v1220 = vpop.f32.mrb[0].mxu0
        %v1221 = vadd.f32 %v862, %v1220
        %v1222 = vpop.f32.mrb[0].mxu0
        %1223 = vmatprep.mubr.f32.mxu0 0.0
        %1224 = vmatmul.mubr.f32.gmra.mrb[0].mxu0 %v1012
        %v1225 = vpop.f32.mrb[0].mxu0
        %v1226 = vadd.f32 %v863, %v1225
        %v1227 = vpop.f32.mrb[0].mxu0
        %1228 = vmatprep.mubr.f32.mxu0 0.0
        %1229 = vmatmul.mubr.f32.gmra.mrb[0].mxu0 %v1015
        %v1230 = vpop.f32.mrb[0].mxu0
        %v1231 = vadd.f32 %v864, %v1230
        %v1232 = vpop.f32.mrb[0].mxu0
        %1233 = vmatprep.mubr.f32.mxu0 0.0
        %1234 = vmatmul.mubr.f32.gmra.mrb[0].mxu0 %v1018
        %v1235 = vpop.f32.mrb[0].mxu0
        %v1236 = vadd.f32 %v865, %v1235
        %v1237 = vpop.f32.mrb[0].mxu0
        %1238 = vmatprep.mubr.f32.mxu0 0.0
        %1239 = vmatmul.mubr.f32.gmra.mrb[0].mxu0 %v1021
        %v1240 = vpop.f32.mrb[0].mxu0
        %v1241 = vadd.f32 %v866, %v1240
        %v1242 = vpop.f32.mrb[0].mxu0
        %1243 = vmatprep.mubr.f32.mxu0 0.0
        %1244 = vmatmul.mubr.f32.gmra.mrb[0].mxu0 %v1024
        %v1245 = vpop.f32.mrb[0].mxu0
        %v1246 = vadd.f32 %v867, %v1245
        %v1247 = vpop.f32.mrb[0].mxu0
        %1248 = vmatprep.mubr.f32.mxu0 0.0
        %1249 = vmatmul.mubr.f32.gmra.mrb[0].mxu0 %v1027
        %v1250 = vpop.f32.mrb[0].mxu0
        %v1251 = vadd.f32 %v868, %v1250
        %v1252 = vpop.f32.mrb[0].mxu0
        %1253 = vmatprep.mubr.f32.mxu0 0.0
        %1254 = vmatmul.mubr.f32.gmra.mrb[0].mxu0 %v1030
        %v1255 = vpop.f32.mrb[0].mxu0
        %v1256 = vadd.f32 %v869, %v1255
        %v1257 = vpop.f32.mrb[0].mxu0
        %1258 = vmatprep.mubr.f32.mxu0 0.0
        %1259 = vmatmul.mubr.f32.gmra.mrb[0].mxu0 %v1033
        %v1260 = vpop.f32.mrb[0].mxu0
        %v1261 = vadd.f32 %v870, %v1260
        %v1262 = vpop.f32.mrb[0].mxu0
        %1263 = vdwg.mxu0
        %1264 = vset.pattern.permute.xlu0 1
        %1265 = vperm.xlu0 %1264, %v522
        %v1266 = vpop.permute.xlu0 %1265
        %v1268 = vlaneseq
        %v1269 = vshrl.u32 %v1268, 7
        %v1270 = vsub.s32 0, %v1269
        %v1271 = vrot.slane %v1266, %v1270
        %v1272 = vmul.f32 %v523, %v1271
        %v1274 = vlaneseq
        %v1275 = vshrl.u32 %v1274, 7
        %v1276 = vsub.s32 1, %v1275
        %v1277 = vrot.slane %v1272, %v1276
        %v1278 = vlaneseq
        %v1279 = vshrl.u32 %v1278, 7
        %v1280 = vsub.s32 3, %v1279
        %v1281 = vrot.slane %v1272, %v1280
        %1284 = vxpose.xlu0.b32.start [1/16] %v1277, 128
        %1285 = vxpose.xlu0.b32.cont [2/16] 0.0, 128
        %1286 = vxpose.xlu0.b32.cont [3/16] 0.0, 128
        %1287 = vxpose.xlu0.b32.cont [4/16] 0.0, 128
        %1288 = vxpose.xlu0.b32.cont [5/16] 0.0, 128
        %1289 = vxpose.xlu0.b32.cont [6/16] 0.0, 128
        %1290 = vxpose.xlu0.b32.cont [7/16] 0.0, 128
        %1291 = vxpose.xlu0.b32.cont [8/16] 0.0, 128
        %1292 = vxpose.xlu0.b32.cont [9/16] 0.0, 128
        %1293 = vxpose.xlu0.b32.cont [10/16] 0.0, 128
        %1294 = vxpose.xlu0.b32.cont [11/16] 0.0, 128
        %1295 = vxpose.xlu0.b32.cont [12/16] 0.0, 128
        %1296 = vxpose.xlu0.b32.cont [13/16] 0.0, 128
        %1297 = vxpose.xlu0.b32.cont [14/16] 0.0, 128
        %1298 = vxpose.xlu0.b32.cont [15/16] 0.0, 128
        %1299 = vxpose.xlu0.b32.end [16/16] 0.0, 128
        %v1300 = vpop.trf.xlu0
        %v1301 = vpop.trf.xlu0
        %v1302 = vpop.trf.xlu0
        %v1303 = vpop.trf.xlu0
        %v1304 = vpop.trf.xlu0
        %v1305 = vpop.trf.xlu0
        %v1306 = vpop.trf.xlu0
        %v1307 = vpop.trf.xlu0
        %v1308 = vpop.trf.xlu0
        %v1309 = vpop.trf.xlu0
        %v1310 = vpop.trf.xlu0
        %v1311 = vpop.trf.xlu0
        %v1312 = vpop.trf.xlu0
        %v1313 = vpop.trf.xlu0
        %v1314 = vpop.trf.xlu0
        %v1315 = vpop.trf.xlu0
        %1316 = vxpose.xlu0.b32.start [1/16] %v1281, 128
        %1317 = vxpose.xlu0.b32.cont [2/16] 0.0, 128
        %1318 = vxpose.xlu0.b32.cont [3/16] 0.0, 128
        %1319 = vxpose.xlu0.b32.cont [4/16] 0.0, 128
        %1320 = vxpose.xlu0.b32.cont [5/16] 0.0, 128
        %1321 = vxpose.xlu0.b32.cont [6/16] 0.0, 128
        %1322 = vxpose.xlu0.b32.cont [7/16] 0.0, 128
        %1323 = vxpose.xlu0.b32.cont [8/16] 0.0, 128
        %1324 = vxpose.xlu0.b32.cont [9/16] 0.0, 128
        %1325 = vxpose.xlu0.b32.cont [10/16] 0.0, 128
        %1326 = vxpose.xlu0.b32.cont [11/16] 0.0, 128
        %1327 = vxpose.xlu0.b32.cont [12/16] 0.0, 128
        %1328 = vxpose.xlu0.b32.cont [13/16] 0.0, 128
        %1329 = vxpose.xlu0.b32.cont [14/16] 0.0, 128
        %1330 = vxpose.xlu0.b32.cont [15/16] 0.0, 128
        %1331 = vxpose.xlu0.b32.end [16/16] 0.0, 128
        %v1332 = vpop.trf.xlu0
        %v1333 = vpop.trf.xlu0
        %v1334 = vpop.trf.xlu0
        %v1335 = vpop.trf.xlu0
        %v1336 = vpop.trf.xlu0
        %v1337 = vpop.trf.xlu0
        %v1338 = vpop.trf.xlu0
        %v1339 = vpop.trf.xlu0
        %v1340 = vpop.trf.xlu0
        %v1341 = vpop.trf.xlu0
        %v1342 = vpop.trf.xlu0
        %v1343 = vpop.trf.xlu0
        %v1344 = vpop.trf.xlu0
        %v1345 = vpop.trf.xlu0
        %v1346 = vpop.trf.xlu0
        %v1347 = vpop.trf.xlu0
        %v1348 = vmul.f32 %v524, %v1271
        %1350 = vset.pattern.permute.xlu0 0
        %1351 = vperm.xlu0 %1350, %v1300
        %v1352 = vpop.permute.xlu0 %1351
        %1355 = vset.pattern.permute.xlu0 0
        %1356 = vperm.xlu0 %1355, %v1301
        %v1357 = vpop.permute.xlu0 %1356
        %1360 = vset.pattern.permute.xlu0 0
        %1361 = vperm.xlu0 %1360, %v1302
        %v1362 = vpop.permute.xlu0 %1361
        %1365 = vset.pattern.permute.xlu0 0
        %1366 = vperm.xlu0 %1365, %v1303
        %v1367 = vpop.permute.xlu0 %1366
        %1370 = vset.pattern.permute.xlu0 0
        %1371 = vperm.xlu0 %1370, %v1304
        %v1372 = vpop.permute.xlu0 %1371
        %1375 = vset.pattern.permute.xlu0 0
        %1376 = vperm.xlu0 %1375, %v1305
        %v1377 = vpop.permute.xlu0 %1376
        %1380 = vset.pattern.permute.xlu0 0
        %1381 = vperm.xlu0 %1380, %v1306
        %v1382 = vpop.permute.xlu0 %1381
        %1385 = vset.pattern.permute.xlu0 0
        %1386 = vperm.xlu0 %1385, %v1307
        %v1387 = vpop.permute.xlu0 %1386
        %1390 = vset.pattern.permute.xlu0 0
        %1391 = vperm.xlu0 %1390, %v1308
        %v1392 = vpop.permute.xlu0 %1391
        %1395 = vset.pattern.permute.xlu0 0
        %1396 = vperm.xlu0 %1395, %v1309
        %v1397 = vpop.permute.xlu0 %1396
        %1400 = vset.pattern.permute.xlu0 0
        %1401 = vperm.xlu0 %1400, %v1310
        %v1402 = vpop.permute.xlu0 %1401
        %1405 = vset.pattern.permute.xlu0 0
        %1406 = vperm.xlu0 %1405, %v1311
        %v1407 = vpop.permute.xlu0 %1406
        %1410 = vset.pattern.permute.xlu0 0
        %1411 = vperm.xlu0 %1410, %v1312
        %v1412 = vpop.permute.xlu0 %1411
        %1415 = vset.pattern.permute.xlu0 0
        %1416 = vperm.xlu0 %1415, %v1313
        %v1417 = vpop.permute.xlu0 %1416
        %1420 = vset.pattern.permute.xlu0 0
        %1421 = vperm.xlu0 %1420, %v1314
        %v1422 = vpop.permute.xlu0 %1421
        %1425 = vset.pattern.permute.xlu0 0
        %1426 = vperm.xlu0 %1425, %v1315
        %v1427 = vpop.permute.xlu0 %1426
        %1430 = vset.pattern.permute.xlu0 0
        %1431 = vperm.xlu0 %1430, %v1332
        %v1432 = vpop.permute.xlu0 %1431
        %1435 = vset.pattern.permute.xlu0 0
        %1436 = vperm.xlu0 %1435, %v1333
        %v1437 = vpop.permute.xlu0 %1436
        %1440 = vset.pattern.permute.xlu0 0
        %1441 = vperm.xlu0 %1440, %v1334
        %v1442 = vpop.permute.xlu0 %1441
        %1445 = vset.pattern.permute.xlu0 0
        %1446 = vperm.xlu0 %1445, %v1335
        %v1447 = vpop.permute.xlu0 %1446
        %1450 = vset.pattern.permute.xlu0 0
        %1451 = vperm.xlu0 %1450, %v1336
        %v1452 = vpop.permute.xlu0 %1451
        %1455 = vset.pattern.permute.xlu0 0
        %1456 = vperm.xlu0 %1455, %v1337
        %v1457 = vpop.permute.xlu0 %1456
        %1460 = vset.pattern.permute.xlu0 0
        %1461 = vperm.xlu0 %1460, %v1338
        %v1462 = vpop.permute.xlu0 %1461
        %1465 = vset.pattern.permute.xlu0 0
        %1466 = vperm.xlu0 %1465, %v1339
        %v1467 = vpop.permute.xlu0 %1466
        %1470 = vset.pattern.permute.xlu0 0
        %1471 = vperm.xlu0 %1470, %v1340
        %v1472 = vpop.permute.xlu0 %1471
        %1475 = vset.pattern.permute.xlu0 0
        %1476 = vperm.xlu0 %1475, %v1341
        %v1477 = vpop.permute.xlu0 %1476
        %1480 = vset.pattern.permute.xlu0 0
        %1481 = vperm.xlu0 %1480, %v1342
        %v1482 = vpop.permute.xlu0 %1481
        %1485 = vset.pattern.permute.xlu0 0
        %1486 = vperm.xlu0 %1485, %v1343
        %v1487 = vpop.permute.xlu0 %1486
        %1490 = vset.pattern.permute.xlu0 0
        %1491 = vperm.xlu0 %1490, %v1344
        %v1492 = vpop.permute.xlu0 %1491
        %1495 = vset.pattern.permute.xlu0 0
        %1496 = vperm.xlu0 %1495, %v1345
        %v1497 = vpop.permute.xlu0 %1496
        %1500 = vset.pattern.permute.xlu0 0
        %1501 = vperm.xlu0 %1500, %v1346
        %v1502 = vpop.permute.xlu0 %1501
        %1505 = vset.pattern.permute.xlu0 0
        %1506 = vperm.xlu0 %1505, %v1347
        %v1507 = vpop.permute.xlu0 %1506
        %v1509 = vlaneseq
        %v1510 = vshrl.u32 %v1509, 7
        %v1511 = vsub.s32 1, %v1510
        %v1512 = vrot.slane %v1348, %v1511
        %v1513 = vsub.f32 %v1352, %v1512
        %v1514 = vsub.f32 %v1357, %v1512
        %v1515 = vsub.f32 %v1362, %v1512
        %v1516 = vsub.f32 %v1367, %v1512
        %v1517 = vsub.f32 %v1372, %v1512
        %v1518 = vsub.f32 %v1377, %v1512
        %v1519 = vsub.f32 %v1382, %v1512
        %v1520 = vsub.f32 %v1387, %v1512
        %v1521 = vsub.f32 %v1392, %v1512
        %v1522 = vsub.f32 %v1397, %v1512
        %v1523 = vsub.f32 %v1402, %v1512
        %v1524 = vsub.f32 %v1407, %v1512
        %v1525 = vsub.f32 %v1412, %v1512
        %v1526 = vsub.f32 %v1417, %v1512
        %v1527 = vsub.f32 %v1422, %v1512
        %v1528 = vsub.f32 %v1427, %v1512
        %v1529 = vsub.f32 %v1432, %v1512
        %v1530 = vsub.f32 %v1437, %v1512
        %v1531 = vsub.f32 %v1442, %v1512
        %v1532 = vsub.f32 %v1447, %v1512
        %v1533 = vsub.f32 %v1452, %v1512
        %v1534 = vsub.f32 %v1457, %v1512
        %v1535 = vsub.f32 %v1462, %v1512
        %v1536 = vsub.f32 %v1467, %v1512
        %v1537 = vsub.f32 %v1472, %v1512
        %v1538 = vsub.f32 %v1477, %v1512
        %v1539 = vsub.f32 %v1482, %v1512
        %v1540 = vsub.f32 %v1487, %v1512
        %v1541 = vsub.f32 %v1492, %v1512
        %v1542 = vsub.f32 %v1497, %v1512
        %v1543 = vsub.f32 %v1502, %v1512
        %v1544 = vsub.f32 %v1507, %v1512
        %v1545 = vand.u32 2147483647, %v1513
        %v1546 = vand.u32 2147483647, %v1514
        %v1547 = vand.u32 2147483647, %v1515
        %v1548 = vand.u32 2147483647, %v1516
        %v1549 = vand.u32 2147483647, %v1517
        %v1550 = vand.u32 2147483647, %v1518
        %v1551 = vand.u32 2147483647, %v1519
        %v1552 = vand.u32 2147483647, %v1520
        %v1553 = vand.u32 2147483647, %v1521
        %v1554 = vand.u32 2147483647, %v1522
        %v1555 = vand.u32 2147483647, %v1523
        %v1556 = vand.u32 2147483647, %v1524
        %v1557 = vand.u32 2147483647, %v1525
        %v1558 = vand.u32 2147483647, %v1526
        %v1559 = vand.u32 2147483647, %v1527
        %v1560 = vand.u32 2147483647, %v1528
        %v1561 = vand.u32 2147483647, %v1529
        %v1562 = vand.u32 2147483647, %v1530
        %v1563 = vand.u32 2147483647, %v1531
        %v1564 = vand.u32 2147483647, %v1532
        %v1565 = vand.u32 2147483647, %v1533
        %v1566 = vand.u32 2147483647, %v1534
        %v1567 = vand.u32 2147483647, %v1535
        %v1568 = vand.u32 2147483647, %v1536
        %v1569 = vand.u32 2147483647, %v1537
        %v1570 = vand.u32 2147483647, %v1538
        %v1571 = vand.u32 2147483647, %v1539
        %v1572 = vand.u32 2147483647, %v1540
        %v1573 = vand.u32 2147483647, %v1541
        %v1574 = vand.u32 2147483647, %v1542
        %v1575 = vand.u32 2147483647, %v1543
        %v1576 = vand.u32 2147483647, %v1544
        %v1577 = vadd.f32 %v1106, %v1545
        %v1578 = vadd.f32 %v1111, %v1546
        %v1579 = vadd.f32 %v1116, %v1547
        %v1580 = vadd.f32 %v1121, %v1548
        %v1581 = vadd.f32 %v1126, %v1549
        %v1582 = vadd.f32 %v1131, %v1550
        %v1583 = vadd.f32 %v1136, %v1551
        %v1584 = vadd.f32 %v1141, %v1552
        %v1585 = vadd.f32 %v1146, %v1553
        %v1586 = vadd.f32 %v1151, %v1554
        %v1587 = vadd.f32 %v1156, %v1555
        %v1588 = vadd.f32 %v1161, %v1556
        %v1589 = vadd.f32 %v1166, %v1557
        %v1590 = vadd.f32 %v1171, %v1558
        %v1591 = vadd.f32 %v1176, %v1559
        %v1592 = vadd.f32 %v1181, %v1560
        %v1593 = vadd.f32 %v1186, %v1561
        %v1594 = vadd.f32 %v1191, %v1562
        %v1595 = vadd.f32 %v1196, %v1563
        %v1596 = vadd.f32 %v1201, %v1564
        %v1597 = vadd.f32 %v1206, %v1565
        %v1598 = vadd.f32 %v1211, %v1566
        %v1599 = vadd.f32 %v1216, %v1567
        %v1600 = vadd.f32 %v1221, %v1568
        %v1601 = vadd.f32 %v1226, %v1569
        %v1602 = vadd.f32 %v1231, %v1570
        %v1603 = vadd.f32 %v1236, %v1571
        %v1604 = vadd.f32 %v1241, %v1572
        %v1605 = vadd.f32 %v1246, %v1573
        %v1606 = vadd.f32 %v1251, %v1574
        %v1607 = vadd.f32 %v1256, %v1575
        %v1608 = vadd.f32 %v1261, %v1576
        %1609 = vst [vmem:[%s386] sm:$0xff] %v1577
        %1610 = vst [vmem:[%s386 + $0x8] sm:$0xff] %v1578
        %1611 = vst [vmem:[%s386 + $0x10] sm:$0xff] %v1579
        %1612 = vst [vmem:[%s386 + $0x18] sm:$0xff] %v1580
        %1613 = vst [vmem:[%s386 + $0x20] sm:$0xff] %v1581
        %1614 = vst [vmem:[%s386 + $0x28] sm:$0xff] %v1582
        %1615 = vst [vmem:[%s386 + $0x30] sm:$0xff] %v1583
        %1616 = vst [vmem:[%s386 + $0x38] sm:$0xff] %v1584
        %1617 = vst [vmem:[%s386 + $0x40] sm:$0xff] %v1585
        %1618 = vst [vmem:[%s386 + $0x48] sm:$0xff] %v1586
        %1619 = vst [vmem:[%s386 + $0x50] sm:$0xff] %v1587
        %1620 = vst [vmem:[%s386 + $0x58] sm:$0xff] %v1588
        %1621 = vst [vmem:[%s386 + $0x60] sm:$0xff] %v1589
        %1622 = vst [vmem:[%s386 + $0x68] sm:$0xff] %v1590
        %1623 = vst [vmem:[%s386 + $0x70] sm:$0xff] %v1591
        %1624 = vst [vmem:[%s386 + $0x78] sm:$0xff] %v1592
        %1625 = vst [vmem:[%s386 + $0x80] sm:$0xff] %v1593
        %1626 = vst [vmem:[%s386 + $0x88] sm:$0xff] %v1594
        %1627 = vst [vmem:[%s386 + $0x90] sm:$0xff] %v1595
        %1628 = vst [vmem:[%s386 + $0x98] sm:$0xff] %v1596
        %1629 = vst [vmem:[%s386 + $0xa0] sm:$0xff] %v1597
        %1630 = vst [vmem:[%s386 + $0xa8] sm:$0xff] %v1598
        %1631 = vst [vmem:[%s386 + $0xb0] sm:$0xff] %v1599
        %1632 = vst [vmem:[%s386 + $0xb8] sm:$0xff] %v1600
        %1633 = vst [vmem:[%s386 + $0xc0] sm:$0xff] %v1601
        %1634 = vst [vmem:[%s386 + $0xc8] sm:$0xff] %v1602
        %1635 = vst [vmem:[%s386 + $0xd0] sm:$0xff] %v1603
        %1636 = vst [vmem:[%s386 + $0xd8] sm:$0xff] %v1604
        %1637 = vst [vmem:[%s386 + $0xe0] sm:$0xff] %v1605
        %1638 = vst [vmem:[%s386 + $0xe8] sm:$0xff] %v1606
        %1639 = vst [vmem:[%s386 + $0xf0] sm:$0xff] %v1607
        %1640 = vst [vmem:[%s386 + $0xf8] sm:$0xff] %v1608
        %s1641 = sand.u32 %s210, 1
        %s1642 = scalar_lea.sflag [#allocation4], %s1641
        %s1643 = sand.u32 %s210, 1
        %s1644 = smul.addr %s1643, 256
        %s1645 = scalar_lea.vmem [#allocation7], %s1644
        // Predicated region
        $region53: #{tpu_custom_call.1} parent=43 // pred_check
          %p1646 = pneg %p220
        $region54: #{tpu_custom_call.1} parent=43 // pred_check_branch
          %1648 = sbr.rel (%p1646) target = $region56
        $region55: #{tpu_custom_call.1} parent=43 // pred_region
          %s1649 = smul.u32 32, %s31
          %s1651 = ssub.s32 4096, 4096
          %1652 = vsyncadd %s1642, %s1651
          %s1653 = smul.addr %s30, 32
          %s1654 = sadd.s32 %s1649, %s1653
          %s1655 = smul.addr %s1654, 128
          %s1656 = scalar_lea.hbm %s6, %s1655
          %s1657 = sshll.u32 %s1645, 4
          %s1658 = int_to_ptr.vmem [resolvable:$true] %s1657
          %1663 = dma.vmem_to_hbm [thread:$0]  %s1658, 4096, %s1656, %s1642, 128, 128, 8
        $region56: #{tpu_custom_call.1} parent=43 // pred_fallthru
          _
      $region44: #{tpu_custom_call.1} parent=5 // pred_fallthru
        _
      %p1664 = scmp.le.s32.totalorder 2, %s21
      // Predicated region
      $region57: #{tpu_custom_call.1} parent=5 // pred_check
        %p1665 = pneg %p1664
      $region58: #{tpu_custom_call.1} parent=5 // pred_check_branch
        %1667 = sbr.rel (%p1665) target = $region60
      $region59: #{tpu_custom_call.1} parent=5 // pred_region
        %s1668 = ssub.s32 %s21, 2
        // Predicated region
        $region61: #{tpu_custom_call.1} parent=59 // pred_check
          %p1669 = pneg %p226
        $region62: #{tpu_custom_call.1} parent=59 // pred_check_branch
          %1671 = sbr.rel (%p1669) target = $region64
        $region63: #{tpu_custom_call.1} parent=59 // pred_region
          %s1672 = sand.u32 %s211, 1
          %s1673 = scalar_lea.sflag [#allocation4], %s1672
          %s1674 = sand.u32 %s211, 1
          %s1675 = smul.addr %s1674, 256
          %s1676 = scalar_lea.vmem [#allocation7], %s1675
          %1677 = dma.done %s1673, 4096
        $region64: #{tpu_custom_call.1} parent=59 // pred_fallthru
          _
      $region60: #{tpu_custom_call.1} parent=5 // pred_fallthru
        _
    $region6: #{tpu_custom_call.1} parent=1 // loop_footer
      %s25 = sadd.s32 1, %s21
    $region7: #{tpu_custom_call.1} parent=1 // loop_footer_branch
      %20 = sbr.rel target = $region3
    $region8: #{tpu_custom_call.1} parent=1 // loop_exit
      _
    %1678 = vsyncpa [#allocation3], 1
    %s1679 = scalar_lea.sflag [#allocation3], 1
    %1680 = vsyncpa %s1679, 1
    %1681 = vsyncpa [#allocation6], 1
    %s1682 = scalar_lea.sflag [#allocation6], 1
    %1683 = vsyncpa %s1682, 1
    %1684 = vsyncpa [#allocation4], 1
    %s1685 = scalar_lea.sflag [#allocation4], 1
    %1686 = vsyncpa %s1685, 1

</llo_original>
